<compile_context>
chip_gen: v6e
topology: v6e:2x2x1
jax: 0.10.0
libtpu: 0.0.40
codegen_flags: <defaults>
</compile_context>

<pallas_src>
import math
import numpy as np

import jax
import jax.numpy as jnp
from jax import lax
from jax.experimental import pallas as pl
from jax.experimental.pallas import tpu as pltpu


# ----------------------------------------------------------------------------
# helpers
# ----------------------------------------------------------------------------
def _gaussian_taps(filter_size, std):
    # matches torch.signal.windows.gaussian(filter_size, std=std) (unnormalized, sym)
    n = np.arange(filter_size, dtype=np.float64) - (filter_size - 1) / 2.0
    return np.exp(-(n ** 2) / (2.0 * float(std) ** 2))


def _vmem_capacity_bytes():
    """Physical VMEM of the attached TPU; conservative default if unknown."""
    try:  # capability probe only -- never fatal
        info = pltpu.get_tpu_info()
        cap = int(getattr(info, "vmem_capacity_bytes", 0) or 0)
        if cap > 0:
            return cap
    except Exception:
        pass
    return 128 * 2 ** 20


# ----------------------------------------------------------------------------
# Pallas kernel
# ----------------------------------------------------------------------------
def make_canny_kernel(H, W, Hp, Wp, bb, filter_size, std, threshold1, threshold2):
    low = float(min(threshold1, threshold2))
    high = float(max(threshold1, threshold2))
    tan_lo = math.sqrt(2.0) - 1.0       # tan(22.5 deg)
    tan_hi = math.sqrt(2.0) + 1.0       # tan(67.5 deg)
    p = filter_size // 2
    g_taps = [float(t) for t in _gaussian_taps(filter_size, std)]
    Rb = bb * Hp                        # stacked rows per grid step (bb images)
    max_d = max(p, 1)

    def kernel(x_ref, o_ref):
        # ---- index planes & keep masks (one iota per axis) -------------------
        rr = lax.broadcasted_iota(jnp.int32, (Rb, Wp), 0)
        cc = lax.broadcasted_iota(jnp.int32, (Rb, Wp), 1)
        rloc = rr % Hp if bb > 1 else rr              # row index inside each image
        hm_pos = {d: rloc <= (H - 1 - d) for d in range(1, max_d + 1)}  # read row i+d
        hm_neg = {d: rloc >= d for d in range(1, max_d + 1)}            # read row i-d
        wm_pos = {d: cc <= (W - 1 - d) for d in range(1, max_d + 1)}    # read col j+d
        wm_neg = {d: cc >= d for d in range(1, max_d + 1)}              # read col j-d

        def roll_h(v, d):                # out[i, j] = v[(i + d) % Rb, j]
            return pltpu.roll(v, (-d) % Rb, 0)

        def roll_w(v, d):                # out[i, j] = v[i, (j + d) % Wp]
            return pltpu.roll(v, (-d) % Wp, 1)

        def sh_h(v, d):                  # zero-padded read of row i+d (no image bleed)
            return jnp.where(hm_pos[d] if d > 0 else hm_neg[-d], roll_h(v, d), 0.0)

        def sh_w(v, d):                  # zero-padded read of col j+d
            return jnp.where(wm_pos[d] if d > 0 else wm_neg[-d], roll_w(v, d), 0.0)

        def gauss_w(v):                  # symmetric taps: pair the +-d reads
            acc = v * g_taps[p]
            for d in range(1, p + 1):
                acc = acc + (sh_w(v, -d) + sh_w(v, d)) * g_taps[p + d]
            return acc

        def gauss_h(v):
            acc = v * g_taps[p]
            for d in range(1, p + 1):
                acc = acc + (sh_h(v, -d) + sh_h(v, d)) * g_taps[p + d]
            return acc

        # ---- gaussian blur + sobel as separable roll convolutions ------------
        gm = jnp.zeros((Rb, Wp), jnp.float32)     # grad magnitude summed over RGB
        gxs = jnp.zeros((Rb, Wp), jnp.float32)    # sum of gx over RGB
        gys = jnp.zeros((Rb, Wp), jnp.float32)    # sum of gy over RGB
        for c in range(3):                         # unrolled channel loop
            blur = gauss_h(gauss_w(x_ref[c]))
            b_up = sh_h(blur, -1)
            b_dn = sh_h(blur, 1)
            s_h = b_up + 2.0 * blur + b_dn         # sobel smooth along H
            d_h = b_up - b_dn                      # sobel diff   along H
            gx = sh_w(s_h, -1) - sh_w(s_h, 1)      # sobel_x = smoothH (x) diffW
            gy = sh_w(d_h, -1) + 2.0 * d_h + sh_w(d_h, 1)   # sobel_y = diffH (x) smoothW
            gm = gm + jnp.sqrt(gx * gx + gy * gy)
            gxs = gxs + gx
            gys = gys + gy

        keep_up, keep_dn = hm_neg[1], hm_pos[1]
        keep_l, keep_r = wm_neg[1], wm_pos[1]

        # ---- non-maximum suppression -----------------------------------------
        # Quantized gradient axis (equivalent to round(atan2/45deg) + the two
        # opposite-offset gathers of the reference): horizontal / vertical /
        # two diagonals selected by the sign agreement of gx_sum, gy_sum.
        g_dn = roll_h(gm, 1)
        g_up = roll_h(gm, -1)
        nb_v = jnp.maximum(jnp.where(keep_dn, g_dn, 0.0),
                           jnp.where(keep_up, g_up, 0.0))
        nb_h = jnp.maximum(jnp.where(keep_r, roll_w(gm, 1), 0.0),
                           jnp.where(keep_l, roll_w(gm, -1), 0.0))
        nb_d1 = jnp.maximum(jnp.where(keep_dn & keep_r, roll_w(g_dn, 1), 0.0),
                            jnp.where(keep_up & keep_l, roll_w(g_up, -1), 0.0))
        nb_d2 = jnp.maximum(jnp.where(keep_dn & keep_l, roll_w(g_dn, -1), 0.0),
                            jnp.where(keep_up & keep_r, roll_w(g_up, 1), 0.0))

        ax = jnp.abs(gxs)
        ay = jnp.abs(gys)
        near_h = ay <= tan_lo * ax
        near_v = ay >= tan_hi * ax
        same_sign = (gxs >= 0.0) == (gys >= 0.0)
        nbr = jnp.where(near_h, nb_h,
                        jnp.where(near_v, nb_v,
                                  jnp.where(same_sign, nb_d1, nb_d2)))
        thin = jnp.where(gm > nbr, gm, 0.0)

        # ---- hysteresis thresholding -------------------------------------------
        strong = thin > high
        middle = (thin >= low) & (thin <= high)
        sf = strong.astype(jnp.float32)
        s3 = (sf
              + jnp.where(keep_dn, roll_h(sf, 1), 0.0)
              + jnp.where(keep_up, roll_h(sf, -1), 0.0))
        connect = (s3 - sf
                   + jnp.where(keep_r, roll_w(s3, 1), 0.0)
                   + jnp.where(keep_l, roll_w(s3, -1), 0.0))   # 8-neighbour strong count
        edge = strong | (middle & (connect > 0.0))

        # zero the true 1-pixel image border (also clears the padded margin)
        interior = keep_up & keep_dn & keep_l & keep_r
        o_ref[...] = jnp.where(edge & interior, 1.0, 0.0).astype(o_ref.dtype)

    return kernel


# ----------------------------------------------------------------------------
# wrapper
# ----------------------------------------------------------------------------
_LIVE_PLANES = 24   # conservative count of simultaneously-live f32 (Hp,Wp) temps per image


def canny_detector(img, threshold1=10.0, threshold2=100.0, filter_size=5, std=1.0,
                   images_per_step=None):
    """Binary Canny edge map (B, 1, H, W) float32, matching CannyDetector.forward."""
    B, C, H, W = img.shape
    assert C == 3, "CannyDetector expects a 3-channel (RGB) NCHW image"
    Hp = -(-H // 16) * 16          # sublane aligned (16 keeps bf16 output tiles aligned)
    Wp = -(-W // 128) * 128        # lane aligned (dense vst, tile-aligned rolls)
    out_dtype = jnp.bfloat16       # exact for a {0,1} edge map; halves writeback

    # ---- generation-aware VMEM budget & images-per-step (bb) -----------------
    vmem_cap = _vmem_capacity_bytes()
    budget = (vmem_cap * 3) // 4               # <=48 MiB on v7x, up to ~96 MiB on v5e/v6e
    plane = Hp * Wp * 4
    out_plane = Hp * Wp * np.dtype(out_dtype).itemsize
    per_image = (2 * 3 + _LIVE_PLANES) * plane + 2 * out_plane
    fixed = 2 * 2 ** 20
    bb_vmem = max(1, (budget - fixed) // per_image)
    if images_per_step is None:
        bb = int(min(B, bb_vmem, max(1, B // 2)))   # grid >= 2: both v7x TCs + DMA overlap
    else:
        bb = int(min(max(1, int(images_per_step)), B, bb_vmem))
    while B % bb:                                   # must evenly tile the batch
        bb -= 1

    # ---- channel-major layout: each grid step = bb whole images per channel --
    x = img.astype(jnp.float32)
    x = jnp.pad(x, ((0, 0), (0, 0), (0, Hp - H), (0, Wp - W)))
    x3d = jnp.transpose(x, (1, 0, 2, 3)).reshape(3, B * Hp, Wp)

    kernel = make_canny_kernel(H, W, Hp, Wp, bb, filter_size, std,
                               threshold1, threshold2)

    vmem_limit = int(min(budget, max(32 * 2 ** 20, fixed + (per_image * bb * 5) // 4)))
    cost = pl.CostEstimate(
        flops=int(170 * B * Hp * Wp),                 # ~13-tap convs x3 + NMS/hysteresis
        transcendentals=int(3 * B * Hp * Wp),         # one sqrt per channel per pixel
        bytes_accessed=int(3 * B * Hp * Wp * 4
                           + B * Hp * Wp * np.dtype(out_dtype).itemsize))

    fn = pl.pallas_call(
        kernel,
        out_shape=jax.ShapeDtypeStruct((B * Hp, Wp), out_dtype),
        grid_spec=pltpu.PrefetchScalarGridSpec(
            num_scalar_prefetch=0,
            grid=(B // bb,),
            in_specs=[pl.BlockSpec((3, bb * Hp, Wp), lambda b: (0, b, 0))],
            out_specs=pl.BlockSpec((bb * Hp, Wp), lambda b: (b, 0)),
        ),
        compiler_params=pltpu.CompilerParams(
            dimension_semantics=("parallel",),
            vmem_limit_bytes=vmem_limit),
        cost_estimate=cost,
    )
    out2d = fn(x3d)
    return out2d.reshape(B, Hp, Wp)[:, None, :H, :W].astype(jnp.float32)


# ----------------------------------------------------------------------------
# pure-JAX (XLA) reference -- direct port of the PyTorch forward, for validation
# ----------------------------------------------------------------------------
def canny_reference(img, threshold1=10.0, threshold2=100.0, filter_size=5, std=1.0):
    f32 = jnp.float32
    img = img.astype(f32)
    g = jnp.asarray(_gaussian_taps(filter_size, std), dtype=f32)

    def conv(x, w):
        kh, kw = w.shape[-2], w.shape[-1]
        return lax.conv_general_dilated(
            x, w.astype(f32), window_strides=(1, 1),
            padding=((kh // 2, kh // 2), (kw // 2, kw // 2)),
            dimension_numbers=("NCHW", "OIHW", "NCHW"),
            precision=lax.Precision.HIGHEST)

    gauss_h = g.reshape(1, 1, 1, filter_size)
    gauss_v = g.reshape(1, 1, filter_size, 1)
    sobel_x = jnp.asarray([[1., 0., -1.], [2., 0., -2.], [1., 0., -1.]], f32).reshape(1, 1, 3, 3)
    sobel_y = jnp.asarray([[1., 2., 1.], [0., 0., 0.], [-1., -2., -1.]], f32).reshape(1, 1, 3, 3)

    grad_mag = jnp.zeros_like(img[:, 0:1])
    gx_sum = jnp.zeros_like(img[:, 0:1])
    gy_sum = jnp.zeros_like(img[:, 0:1])
    for c in range(3):
        blur = conv(conv(img[:, c:c + 1], gauss_h), gauss_v)
        gx = conv(blur, sobel_x)
        gy = conv(blur, sobel_y)
        grad_mag = grad_mag + jnp.sqrt(gx * gx + gy * gy)
        gx_sum = gx_sum + gx
        gy_sum = gy_sum + gy

    orientation = jnp.arctan2(gy_sum, gx_sum) * (180.0 / math.pi) + 180.0
    orientation = jnp.round(orientation / 45.0) * 45.0
    idx_pos = (orientation / 45.0 % 8.0).astype(jnp.int32)
    idx_neg = ((orientation / 45.0 + 4.0) % 8.0).astype(jnp.int32)

    offs = [(0, 1), (1, 1), (1, 0), (1, -1), (0, -1), (-1, -1), (-1, 0), (-1, 1)]
    dir_w = np.zeros((8, 1, 3, 3), np.float32)
    dir_w[:, 0, 1, 1] = 1.0
    for k, (dy, dx) in enumerate(offs):
        dir_w[k, 0, 1 + dy, 1 + dx] = -1.0
    all_filtered = conv(grad_mag, jnp.asarray(dir_w))

    sel_pos = jnp.take_along_axis(all_filtered, idx_pos, axis=1)
    sel_neg = jnp.take_along_axis(all_filtered, idx_neg, axis=1)
    thin = jnp.where(jnp.minimum(sel_pos, sel_neg) > 0.0, grad_mag, 0.0)

    low = min(threshold1, threshold2)
    high = max(threshold1, threshold2)
    thresholded = jnp.where(thin < low, 0.0, thin)
    higher = thin > high
    thresholded = jnp.where(higher, 1.0, thresholded)
    connect_w = jnp.asarray([[1., 1., 1.], [1., 0., 1.], [1., 1., 1.]], f32).reshape(1, 1, 3, 3)
    connect_map = conv(higher.astype(f32), connect_w)
    middle = (thin >= low) & (thin <= high)
    thresholded = jnp.where(middle, 0.0, thresholded)
    connect_map = jnp.where(~middle, 0.0, connect_map)
    thresholded = jnp.where(connect_map > 0.0, 1.0, thresholded)
    thresholded = thresholded.at[..., 0, :].set(0.0)
    thresholded = thresholded.at[..., -1, :].set(0.0)
    thresholded = thresholded.at[..., :, 0].set(0.0)
    thresholded = thresholded.at[..., :, -1].set(0.0)
    return (thresholded > 0.0).astype(f32)


if __name__ == "__main__":
    key = jax.random.PRNGKey(0)
    img = jax.random.uniform(key, (2, 3, 16, 16), dtype=jnp.float32,
                             minval=0.0, maxval=255.0)

    out = canny_detector(img)
    out = jax.block_until_ready(out)

    assert out.shape == (2, 1, 16, 16)
    assert out.dtype == jnp.float32
    assert bool(jnp.all((out == 0.0) | (out == 1.0)))   # binary edge map

    # validate against a pure-JAX port of the PyTorch forward; allow a handful
    # of pixels to differ (orientation / threshold ties under different but
    # equally valid f32 summation orders).
    ref = jax.block_until_ready(canny_reference(img))
    mismatch = int(jnp.sum(out != ref))
    assert mismatch <= max(4, out.size // 100), f"mismatch={mismatch}/{out.size}"

    print("KERNEL_OK")
</pallas_src>

<mosaic_0001>
module attributes {stable_mosaic.version = 11 : i64} {
  func.func @kernel(%arg0: i32, %arg1: memref<3x16x128xf32, #tpu.memory_space<vmem>>, %arg2: memref<16x128xbf16, #tpu.memory_space<vmem>>) attributes {dimension_semantics = [#tpu.dimension_semantics<parallel>], iteration_bounds = array<i64: 2>, scalar_prefetch = 0 : i64, scratch_operands = 0 : i64, tpu.core_type = #tpu.core_type<tc>, window_params = [{transform_indices = @transform_0, window_bounds = array<i64: 3, 16, 128>}, {transform_indices = @transform_1, window_bounds = array<i64: 16, 128>}]} {
    %0 = tpu.iota {dimensions = array<i32: 0>} : vector<16x128xi32>
    %1 = tpu.iota {dimensions = array<i32: 1>} : vector<16x128xi32>
    %c14_i32 = arith.constant 14 : i32
    %2 = vector.broadcast %c14_i32 : i32 to vector<16x128xi32>
    %3 = arith.cmpi sle, %0, %2 : vector<16x128xi32>
    %c13_i32 = arith.constant 13 : i32
    %4 = vector.broadcast %c13_i32 : i32 to vector<16x128xi32>
    %5 = arith.cmpi sle, %0, %4 : vector<16x128xi32>
    %c1_i32 = arith.constant 1 : i32
    %6 = vector.broadcast %c1_i32 : i32 to vector<16x128xi32>
    %7 = arith.cmpi sge, %0, %6 : vector<16x128xi32>
    %c2_i32 = arith.constant 2 : i32
    %8 = vector.broadcast %c2_i32 : i32 to vector<16x128xi32>
    %9 = arith.cmpi sge, %0, %8 : vector<16x128xi32>
    %c14_i32_0 = arith.constant 14 : i32
    %10 = vector.broadcast %c14_i32_0 : i32 to vector<16x128xi32>
    %11 = arith.cmpi sle, %1, %10 : vector<16x128xi32>
    %c13_i32_1 = arith.constant 13 : i32
    %12 = vector.broadcast %c13_i32_1 : i32 to vector<16x128xi32>
    %13 = arith.cmpi sle, %1, %12 : vector<16x128xi32>
    %c1_i32_2 = arith.constant 1 : i32
    %14 = vector.broadcast %c1_i32_2 : i32 to vector<16x128xi32>
    %15 = arith.cmpi sge, %1, %14 : vector<16x128xi32>
    %c2_i32_3 = arith.constant 2 : i32
    %16 = vector.broadcast %c2_i32_3 : i32 to vector<16x128xi32>
    %17 = arith.cmpi sge, %1, %16 : vector<16x128xi32>
    %cst = arith.constant 0.000000e+00 : f32
    %18 = vector.broadcast %cst : f32 to vector<16x128xf32>
    %cst_4 = arith.constant 0.000000e+00 : f32
    %19 = vector.broadcast %cst_4 : f32 to vector<16x128xf32>
    %cst_5 = arith.constant 0.000000e+00 : f32
    %20 = vector.broadcast %cst_5 : f32 to vector<16x128xf32>
    %c0 = arith.constant 0 : index
    %c0_6 = arith.constant 0 : index
    %c0_7 = arith.constant 0 : index
    %21 = vector.load %arg1[%c0, %c0_6, %c0_7] : memref<3x16x128xf32, #tpu.memory_space<vmem>>, vector<1x16x128xf32>
    %22 = vector.shape_cast %21 : vector<1x16x128xf32> to vector<16x128xf32>
    %cst_8 = arith.constant 1.000000e+00 : f32
    %23 = vector.broadcast %cst_8 : f32 to vector<16x128xf32>
    %24 = arith.mulf %22, %23 : vector<16x128xf32>
    %c1_i32_9 = arith.constant 1 : i32
    %25 = tpu.dynamic_rotate %22 by %c1_i32_9 dim 1 : vector<16x128xf32>, i32 -> vector<16x128xf32>
    %cst_10 = arith.constant 0.000000e+00 : f32
    %26 = vector.broadcast %cst_10 : f32 to vector<16x128xf32>
    %27 = arith.select %15, %25, %26 : vector<16x128xi1>, vector<16x128xf32>
    %c127_i32 = arith.constant 127 : i32
    %28 = tpu.dynamic_rotate %22 by %c127_i32 dim 1 : vector<16x128xf32>, i32 -> vector<16x128xf32>
    %cst_11 = arith.constant 0.000000e+00 : f32
    %29 = vector.broadcast %cst_11 : f32 to vector<16x128xf32>
    %30 = arith.select %11, %28, %29 : vector<16x128xi1>, vector<16x128xf32>
    %31 = arith.addf %27, %30 : vector<16x128xf32>
    %cst_12 = arith.constant 0.606530666 : f32
    %32 = vector.broadcast %cst_12 : f32 to vector<16x128xf32>
    %33 = arith.mulf %31, %32 : vector<16x128xf32>
    %34 = arith.addf %24, %33 : vector<16x128xf32>
    %c2_i32_13 = arith.constant 2 : i32
    %35 = tpu.dynamic_rotate %22 by %c2_i32_13 dim 1 : vector<16x128xf32>, i32 -> vector<16x128xf32>
    %cst_14 = arith.constant 0.000000e+00 : f32
    %36 = vector.broadcast %cst_14 : f32 to vector<16x128xf32>
    %37 = arith.select %17, %35, %36 : vector<16x128xi1>, vector<16x128xf32>
    %c126_i32 = arith.constant 126 : i32
    %38 = tpu.dynamic_rotate %22 by %c126_i32 dim 1 : vector<16x128xf32>, i32 -> vector<16x128xf32>
    %cst_15 = arith.constant 0.000000e+00 : f32
    %39 = vector.broadcast %cst_15 : f32 to vector<16x128xf32>
    %40 = arith.select %13, %38, %39 : vector<16x128xi1>, vector<16x128xf32>
    %41 = arith.addf %37, %40 : vector<16x128xf32>
    %cst_16 = arith.constant 0.135335281 : f32
    %42 = vector.broadcast %cst_16 : f32 to vector<16x128xf32>
    %43 = arith.mulf %41, %42 : vector<16x128xf32>
    %44 = arith.addf %34, %43 : vector<16x128xf32>
    %cst_17 = arith.constant 1.000000e+00 : f32
    %45 = vector.broadcast %cst_17 : f32 to vector<16x128xf32>
    %46 = arith.mulf %44, %45 : vector<16x128xf32>
    %c1_i32_18 = arith.constant 1 : i32
    %47 = tpu.dynamic_rotate %44 by %c1_i32_18 dim 0 : vector<16x128xf32>, i32 -> vector<16x128xf32>
    %cst_19 = arith.constant 0.000000e+00 : f32
    %48 = vector.broadcast %cst_19 : f32 to vector<16x128xf32>
    %49 = arith.select %7, %47, %48 : vector<16x128xi1>, vector<16x128xf32>
    %c15_i32 = arith.constant 15 : i32
    %50 = tpu.dynamic_rotate %44 by %c15_i32 dim 0 : vector<16x128xf32>, i32 -> vector<16x128xf32>
    %cst_20 = arith.constant 0.000000e+00 : f32
    %51 = vector.broadcast %cst_20 : f32 to vector<16x128xf32>
    %52 = arith.select %3, %50, %51 : vector<16x128xi1>, vector<16x128xf32>
    %53 = arith.addf %49, %52 : vector<16x128xf32>
    %cst_21 = arith.constant 0.606530666 : f32
    %54 = vector.broadcast %cst_21 : f32 to vector<16x128xf32>
    %55 = arith.mulf %53, %54 : vector<16x128xf32>
    %56 = arith.addf %46, %55 : vector<16x128xf32>
    %c2_i32_22 = arith.constant 2 : i32
    %57 = tpu.dynamic_rotate %44 by %c2_i32_22 dim 0 : vector<16x128xf32>, i32 -> vector<16x128xf32>
    %cst_23 = arith.constant 0.000000e+00 : f32
    %58 = vector.broadcast %cst_23 : f32 to vector<16x128xf32>
    %59 = arith.select %9, %57, %58 : vector<16x128xi1>, vector<16x128xf32>
    %c14_i32_24 = arith.constant 14 : i32
    %60 = tpu.dynamic_rotate %44 by %c14_i32_24 dim 0 : vector<16x128xf32>, i32 -> vector<16x128xf32>
    %cst_25 = arith.constant 0.000000e+00 : f32
    %61 = vector.broadcast %cst_25 : f32 to vector<16x128xf32>
    %62 = arith.select %5, %60, %61 : vector<16x128xi1>, vector<16x128xf32>
    %63 = arith.addf %59, %62 : vector<16x128xf32>
    %cst_26 = arith.constant 0.135335281 : f32
    %64 = vector.broadcast %cst_26 : f32 to vector<16x128xf32>
    %65 = arith.mulf %63, %64 : vector<16x128xf32>
    %66 = arith.addf %56, %65 : vector<16x128xf32>
    %c1_i32_27 = arith.constant 1 : i32
    %67 = tpu.dynamic_rotate %66 by %c1_i32_27 dim 0 : vector<16x128xf32>, i32 -> vector<16x128xf32>
    %cst_28 = arith.constant 0.000000e+00 : f32
    %68 = vector.broadcast %cst_28 : f32 to vector<16x128xf32>
    %69 = arith.select %7, %67, %68 : vector<16x128xi1>, vector<16x128xf32>
    %c15_i32_29 = arith.constant 15 : i32
    %70 = tpu.dynamic_rotate %66 by %c15_i32_29 dim 0 : vector<16x128xf32>, i32 -> vector<16x128xf32>
    %cst_30 = arith.constant 0.000000e+00 : f32
    %71 = vector.broadcast %cst_30 : f32 to vector<16x128xf32>
    %72 = arith.select %3, %70, %71 : vector<16x128xi1>, vector<16x128xf32>
    %cst_31 = arith.constant 2.000000e+00 : f32
    %73 = vector.broadcast %cst_31 : f32 to vector<16x128xf32>
    %74 = arith.mulf %73, %66 : vector<16x128xf32>
    %75 = arith.addf %69, %74 : vector<16x128xf32>
    %76 = arith.addf %75, %72 : vector<16x128xf32>
    %77 = arith.subf %69, %72 : vector<16x128xf32>
    %c1_i32_32 = arith.constant 1 : i32
    %78 = tpu.dynamic_rotate %76 by %c1_i32_32 dim 1 : vector<16x128xf32>, i32 -> vector<16x128xf32>
    %cst_33 = arith.constant 0.000000e+00 : f32
    %79 = vector.broadcast %cst_33 : f32 to vector<16x128xf32>
    %80 = arith.select %15, %78, %79 : vector<16x128xi1>, vector<16x128xf32>
    %c127_i32_34 = arith.constant 127 : i32
    %81 = tpu.dynamic_rotate %76 by %c127_i32_34 dim 1 : vector<16x128xf32>, i32 -> vector<16x128xf32>
    %cst_35 = arith.constant 0.000000e+00 : f32
    %82 = vector.broadcast %cst_35 : f32 to vector<16x128xf32>
    %83 = arith.select %11, %81, %82 : vector<16x128xi1>, vector<16x128xf32>
    %84 = arith.subf %80, %83 : vector<16x128xf32>
    %c1_i32_36 = arith.constant 1 : i32
    %85 = tpu.dynamic_rotate %77 by %c1_i32_36 dim 1 : vector<16x128xf32>, i32 -> vector<16x128xf32>
    %cst_37 = arith.constant 0.000000e+00 : f32
    %86 = vector.broadcast %cst_37 : f32 to vector<16x128xf32>
    %87 = arith.select %15, %85, %86 : vector<16x128xi1>, vector<16x128xf32>
    %cst_38 = arith.constant 2.000000e+00 : f32
    %88 = vector.broadcast %cst_38 : f32 to vector<16x128xf32>
    %89 = arith.mulf %88, %77 : vector<16x128xf32>
    %90 = arith.addf %87, %89 : vector<16x128xf32>
    %c127_i32_39 = arith.constant 127 : i32
    %91 = tpu.dynamic_rotate %77 by %c127_i32_39 dim 1 : vector<16x128xf32>, i32 -> vector<16x128xf32>
    %cst_40 = arith.constant 0.000000e+00 : f32
    %92 = vector.broadcast %cst_40 : f32 to vector<16x128xf32>
    %93 = arith.select %11, %91, %92 : vector<16x128xi1>, vector<16x128xf32>
    %94 = arith.addf %90, %93 : vector<16x128xf32>
    %95 = arith.mulf %84, %84 : vector<16x128xf32>
    %96 = arith.mulf %94, %94 : vector<16x128xf32>
    %97 = arith.addf %95, %96 : vector<16x128xf32>
    %98 = math.sqrt %97 : vector<16x128xf32>
    %99 = arith.addf %18, %98 : vector<16x128xf32>
    %100 = arith.addf %19, %84 : vector<16x128xf32>
    %101 = arith.addf %20, %94 : vector<16x128xf32>
    %c1 = arith.constant 1 : index
    %c0_41 = arith.constant 0 : index
    %c0_42 = arith.constant 0 : index
    %102 = vector.load %arg1[%c1, %c0_41, %c0_42] : memref<3x16x128xf32, #tpu.memory_space<vmem>>, vector<1x16x128xf32>
    %103 = vector.shape_cast %102 : vector<1x16x128xf32> to vector<16x128xf32>
    %cst_43 = arith.constant 1.000000e+00 : f32
    %104 = vector.broadcast %cst_43 : f32 to vector<16x128xf32>
    %105 = arith.mulf %103, %104 : vector<16x128xf32>
    %c1_i32_44 = arith.constant 1 : i32
    %106 = tpu.dynamic_rotate %103 by %c1_i32_44 dim 1 : vector<16x128xf32>, i32 -> vector<16x128xf32>
    %cst_45 = arith.constant 0.000000e+00 : f32
    %107 = vector.broadcast %cst_45 : f32 to vector<16x128xf32>
    %108 = arith.select %15, %106, %107 : vector<16x128xi1>, vector<16x128xf32>
    %c127_i32_46 = arith.constant 127 : i32
    %109 = tpu.dynamic_rotate %103 by %c127_i32_46 dim 1 : vector<16x128xf32>, i32 -> vector<16x128xf32>
    %cst_47 = arith.constant 0.000000e+00 : f32
    %110 = vector.broadcast %cst_47 : f32 to vector<16x128xf32>
    %111 = arith.select %11, %109, %110 : vector<16x128xi1>, vector<16x128xf32>
    %112 = arith.addf %108, %111 : vector<16x128xf32>
    %cst_48 = arith.constant 0.606530666 : f32
    %113 = vector.broadcast %cst_48 : f32 to vector<16x128xf32>
    %114 = arith.mulf %112, %113 : vector<16x128xf32>
    %115 = arith.addf %105, %114 : vector<16x128xf32>
    %c2_i32_49 = arith.constant 2 : i32
    %116 = tpu.dynamic_rotate %103 by %c2_i32_49 dim 1 : vector<16x128xf32>, i32 -> vector<16x128xf32>
    %cst_50 = arith.constant 0.000000e+00 : f32
    %117 = vector.broadcast %cst_50 : f32 to vector<16x128xf32>
    %118 = arith.select %17, %116, %117 : vector<16x128xi1>, vector<16x128xf32>
    %c126_i32_51 = arith.constant 126 : i32
    %119 = tpu.dynamic_rotate %103 by %c126_i32_51 dim 1 : vector<16x128xf32>, i32 -> vector<16x128xf32>
    %cst_52 = arith.constant 0.000000e+00 : f32
    %120 = vector.broadcast %cst_52 : f32 to vector<16x128xf32>
    %121 = arith.select %13, %119, %120 : vector<16x128xi1>, vector<16x128xf32>
    %122 = arith.addf %118, %121 : vector<16x128xf32>
    %cst_53 = arith.constant 0.135335281 : f32
    %123 = vector.broadcast %cst_53 : f32 to vector<16x128xf32>
    %124 = arith.mulf %122, %123 : vector<16x128xf32>
    %125 = arith.addf %115, %124 : vector<16x128xf32>
    %cst_54 = arith.constant 1.000000e+00 : f32
    %126 = vector.broadcast %cst_54 : f32 to vector<16x128xf32>
    %127 = arith.mulf %125, %126 : vector<16x128xf32>
    %c1_i32_55 = arith.constant 1 : i32
    %128 = tpu.dynamic_rotate %125 by %c1_i32_55 dim 0 : vector<16x128xf32>, i32 -> vector<16x128xf32>
    %cst_56 = arith.constant 0.000000e+00 : f32
    %129 = vector.broadcast %cst_56 : f32 to vector<16x128xf32>
    %130 = arith.select %7, %128, %129 : vector<16x128xi1>, vector<16x128xf32>
    %c15_i32_57 = arith.constant 15 : i32
    %131 = tpu.dynamic_rotate %125 by %c15_i32_57 dim 0 : vector<16x128xf32>, i32 -> vector<16x128xf32>
    %cst_58 = arith.constant 0.000000e+00 : f32
    %132 = vector.broadcast %cst_58 : f32 to vector<16x128xf32>
    %133 = arith.select %3, %131, %132 : vector<16x128xi1>, vector<16x128xf32>
    %134 = arith.addf %130, %133 : vector<16x128xf32>
    %cst_59 = arith.constant 0.606530666 : f32
    %135 = vector.broadcast %cst_59 : f32 to vector<16x128xf32>
    %136 = arith.mulf %134, %135 : vector<16x128xf32>
    %137 = arith.addf %127, %136 : vector<16x128xf32>
    %c2_i32_60 = arith.constant 2 : i32
    %138 = tpu.dynamic_rotate %125 by %c2_i32_60 dim 0 : vector<16x128xf32>, i32 -> vector<16x128xf32>
    %cst_61 = arith.constant 0.000000e+00 : f32
    %139 = vector.broadcast %cst_61 : f32 to vector<16x128xf32>
    %140 = arith.select %9, %138, %139 : vector<16x128xi1>, vector<16x128xf32>
    %c14_i32_62 = arith.constant 14 : i32
    %141 = tpu.dynamic_rotate %125 by %c14_i32_62 dim 0 : vector<16x128xf32>, i32 -> vector<16x128xf32>
    %cst_63 = arith.constant 0.000000e+00 : f32
    %142 = vector.broadcast %cst_63 : f32 to vector<16x128xf32>
    %143 = arith.select %5, %141, %142 : vector<16x128xi1>, vector<16x128xf32>
    %144 = arith.addf %140, %143 : vector<16x128xf32>
    %cst_64 = arith.constant 0.135335281 : f32
    %145 = vector.broadcast %cst_64 : f32 to vector<16x128xf32>
    %146 = arith.mulf %144, %145 : vector<16x128xf32>
    %147 = arith.addf %137, %146 : vector<16x128xf32>
    %c1_i32_65 = arith.constant 1 : i32
    %148 = tpu.dynamic_rotate %147 by %c1_i32_65 dim 0 : vector<16x128xf32>, i32 -> vector<16x128xf32>
    %cst_66 = arith.constant 0.000000e+00 : f32
    %149 = vector.broadcast %cst_66 : f32 to vector<16x128xf32>
    %150 = arith.select %7, %148, %149 : vector<16x128xi1>, vector<16x128xf32>
    %c15_i32_67 = arith.constant 15 : i32
    %151 = tpu.dynamic_rotate %147 by %c15_i32_67 dim 0 : vector<16x128xf32>, i32 -> vector<16x128xf32>
    %cst_68 = arith.constant 0.000000e+00 : f32
    %152 = vector.broadcast %cst_68 : f32 to vector<16x128xf32>
    %153 = arith.select %3, %151, %152 : vector<16x128xi1>, vector<16x128xf32>
    %cst_69 = arith.constant 2.000000e+00 : f32
    %154 = vector.broadcast %cst_69 : f32 to vector<16x128xf32>
    %155 = arith.mulf %154, %147 : vector<16x128xf32>
    %156 = arith.addf %150, %155 : vector<16x128xf32>
    %157 = arith.addf %156, %153 : vector<16x128xf32>
    %158 = arith.subf %150, %153 : vector<16x128xf32>
    %c1_i32_70 = arith.constant 1 : i32
    %159 = tpu.dynamic_rotate %157 by %c1_i32_70 dim 1 : vector<16x128xf32>, i32 -> vector<16x128xf32>
    %cst_71 = arith.constant 0.000000e+00 : f32
    %160 = vector.broadcast %cst_71 : f32 to vector<16x128xf32>
    %161 = arith.select %15, %159, %160 : vector<16x128xi1>, vector<16x128xf32>
    %c127_i32_72 = arith.constant 127 : i32
    %162 = tpu.dynamic_rotate %157 by %c127_i32_72 dim 1 : vector<16x128xf32>, i32 -> vector<16x128xf32>
    %cst_73 = arith.constant 0.000000e+00 : f32
    %163 = vector.broadcast %cst_73 : f32 to vector<16x128xf32>
    %164 = arith.select %11, %162, %163 : vector<16x128xi1>, vector<16x128xf32>
    %165 = arith.subf %161, %164 : vector<16x128xf32>
    %c1_i32_74 = arith.constant 1 : i32
    %166 = tpu.dynamic_rotate %158 by %c1_i32_74 dim 1 : vector<16x128xf32>, i32 -> vector<16x128xf32>
    %cst_75 = arith.constant 0.000000e+00 : f32
    %167 = vector.broadcast %cst_75 : f32 to vector<16x128xf32>
    %168 = arith.select %15, %166, %167 : vector<16x128xi1>, vector<16x128xf32>
    %cst_76 = arith.constant 2.000000e+00 : f32
    %169 = vector.broadcast %cst_76 : f32 to vector<16x128xf32>
    %170 = arith.mulf %169, %158 : vector<16x128xf32>
    %171 = arith.addf %168, %170 : vector<16x128xf32>
    %c127_i32_77 = arith.constant 127 : i32
    %172 = tpu.dynamic_rotate %158 by %c127_i32_77 dim 1 : vector<16x128xf32>, i32 -> vector<16x128xf32>
    %cst_78 = arith.constant 0.000000e+00 : f32
    %173 = vector.broadcast %cst_78 : f32 to vector<16x128xf32>
    %174 = arith.select %11, %172, %173 : vector<16x128xi1>, vector<16x128xf32>
    %175 = arith.addf %171, %174 : vector<16x128xf32>
    %176 = arith.mulf %165, %165 : vector<16x128xf32>
    %177 = arith.mulf %175, %175 : vector<16x128xf32>
    %178 = arith.addf %176, %177 : vector<16x128xf32>
    %179 = math.sqrt %178 : vector<16x128xf32>
    %180 = arith.addf %99, %179 : vector<16x128xf32>
    %181 = arith.addf %100, %165 : vector<16x128xf32>
    %182 = arith.addf %101, %175 : vector<16x128xf32>
    %c2 = arith.constant 2 : index
    %c0_79 = arith.constant 0 : index
    %c0_80 = arith.constant 0 : index
    %183 = vector.load %arg1[%c2, %c0_79, %c0_80] : memref<3x16x128xf32, #tpu.memory_space<vmem>>, vector<1x16x128xf32>
    %184 = vector.shape_cast %183 : vector<1x16x128xf32> to vector<16x128xf32>
    %cst_81 = arith.constant 1.000000e+00 : f32
    %185 = vector.broadcast %cst_81 : f32 to vector<16x128xf32>
    %186 = arith.mulf %184, %185 : vector<16x128xf32>
    %c1_i32_82 = arith.constant 1 : i32
    %187 = tpu.dynamic_rotate %184 by %c1_i32_82 dim 1 : vector<16x128xf32>, i32 -> vector<16x128xf32>
    %cst_83 = arith.constant 0.000000e+00 : f32
    %188 = vector.broadcast %cst_83 : f32 to vector<16x128xf32>
    %189 = arith.select %15, %187, %188 : vector<16x128xi1>, vector<16x128xf32>
    %c127_i32_84 = arith.constant 127 : i32
    %190 = tpu.dynamic_rotate %184 by %c127_i32_84 dim 1 : vector<16x128xf32>, i32 -> vector<16x128xf32>
    %cst_85 = arith.constant 0.000000e+00 : f32
    %191 = vector.broadcast %cst_85 : f32 to vector<16x128xf32>
    %192 = arith.select %11, %190, %191 : vector<16x128xi1>, vector<16x128xf32>
    %193 = arith.addf %189, %192 : vector<16x128xf32>
    %cst_86 = arith.constant 0.606530666 : f32
    %194 = vector.broadcast %cst_86 : f32 to vector<16x128xf32>
    %195 = arith.mulf %193, %194 : vector<16x128xf32>
    %196 = arith.addf %186, %195 : vector<16x128xf32>
    %c2_i32_87 = arith.constant 2 : i32
    %197 = tpu.dynamic_rotate %184 by %c2_i32_87 dim 1 : vector<16x128xf32>, i32 -> vector<16x128xf32>
    %cst_88 = arith.constant 0.000000e+00 : f32
    %198 = vector.broadcast %cst_88 : f32 to vector<16x128xf32>
    %199 = arith.select %17, %197, %198 : vector<16x128xi1>, vector<16x128xf32>
    %c126_i32_89 = arith.constant 126 : i32
    %200 = tpu.dynamic_rotate %184 by %c126_i32_89 dim 1 : vector<16x128xf32>, i32 -> vector<16x128xf32>
    %cst_90 = arith.constant 0.000000e+00 : f32
    %201 = vector.broadcast %cst_90 : f32 to vector<16x128xf32>
    %202 = arith.select %13, %200, %201 : vector<16x128xi1>, vector<16x128xf32>
    %203 = arith.addf %199, %202 : vector<16x128xf32>
    %cst_91 = arith.constant 0.135335281 : f32
    %204 = vector.broadcast %cst_91 : f32 to vector<16x128xf32>
    %205 = arith.mulf %203, %204 : vector<16x128xf32>
    %206 = arith.addf %196, %205 : vector<16x128xf32>
    %cst_92 = arith.constant 1.000000e+00 : f32
    %207 = vector.broadcast %cst_92 : f32 to vector<16x128xf32>
    %208 = arith.mulf %206, %207 : vector<16x128xf32>
    %c1_i32_93 = arith.constant 1 : i32
    %209 = tpu.dynamic_rotate %206 by %c1_i32_93 dim 0 : vector<16x128xf32>, i32 -> vector<16x128xf32>
    %cst_94 = arith.constant 0.000000e+00 : f32
    %210 = vector.broadcast %cst_94 : f32 to vector<16x128xf32>
    %211 = arith.select %7, %209, %210 : vector<16x128xi1>, vector<16x128xf32>
    %c15_i32_95 = arith.constant 15 : i32
    %212 = tpu.dynamic_rotate %206 by %c15_i32_95 dim 0 : vector<16x128xf32>, i32 -> vector<16x128xf32>
    %cst_96 = arith.constant 0.000000e+00 : f32
    %213 = vector.broadcast %cst_96 : f32 to vector<16x128xf32>
    %214 = arith.select %3, %212, %213 : vector<16x128xi1>, vector<16x128xf32>
    %215 = arith.addf %211, %214 : vector<16x128xf32>
    %cst_97 = arith.constant 0.606530666 : f32
    %216 = vector.broadcast %cst_97 : f32 to vector<16x128xf32>
    %217 = arith.mulf %215, %216 : vector<16x128xf32>
    %218 = arith.addf %208, %217 : vector<16x128xf32>
    %c2_i32_98 = arith.constant 2 : i32
    %219 = tpu.dynamic_rotate %206 by %c2_i32_98 dim 0 : vector<16x128xf32>, i32 -> vector<16x128xf32>
    %cst_99 = arith.constant 0.000000e+00 : f32
    %220 = vector.broadcast %cst_99 : f32 to vector<16x128xf32>
    %221 = arith.select %9, %219, %220 : vector<16x128xi1>, vector<16x128xf32>
    %c14_i32_100 = arith.constant 14 : i32
    %222 = tpu.dynamic_rotate %206 by %c14_i32_100 dim 0 : vector<16x128xf32>, i32 -> vector<16x128xf32>
    %cst_101 = arith.constant 0.000000e+00 : f32
    %223 = vector.broadcast %cst_101 : f32 to vector<16x128xf32>
    %224 = arith.select %5, %222, %223 : vector<16x128xi1>, vector<16x128xf32>
    %225 = arith.addf %221, %224 : vector<16x128xf32>
    %cst_102 = arith.constant 0.135335281 : f32
    %226 = vector.broadcast %cst_102 : f32 to vector<16x128xf32>
    %227 = arith.mulf %225, %226 : vector<16x128xf32>
    %228 = arith.addf %218, %227 : vector<16x128xf32>
    %c1_i32_103 = arith.constant 1 : i32
    %229 = tpu.dynamic_rotate %228 by %c1_i32_103 dim 0 : vector<16x128xf32>, i32 -> vector<16x128xf32>
    %cst_104 = arith.constant 0.000000e+00 : f32
    %230 = vector.broadcast %cst_104 : f32 to vector<16x128xf32>
    %231 = arith.select %7, %229, %230 : vector<16x128xi1>, vector<16x128xf32>
    %c15_i32_105 = arith.constant 15 : i32
    %232 = tpu.dynamic_rotate %228 by %c15_i32_105 dim 0 : vector<16x128xf32>, i32 -> vector<16x128xf32>
    %cst_106 = arith.constant 0.000000e+00 : f32
    %233 = vector.broadcast %cst_106 : f32 to vector<16x128xf32>
    %234 = arith.select %3, %232, %233 : vector<16x128xi1>, vector<16x128xf32>
    %cst_107 = arith.constant 2.000000e+00 : f32
    %235 = vector.broadcast %cst_107 : f32 to vector<16x128xf32>
    %236 = arith.mulf %235, %228 : vector<16x128xf32>
    %237 = arith.addf %231, %236 : vector<16x128xf32>
    %238 = arith.addf %237, %234 : vector<16x128xf32>
    %239 = arith.subf %231, %234 : vector<16x128xf32>
    %c1_i32_108 = arith.constant 1 : i32
    %240 = tpu.dynamic_rotate %238 by %c1_i32_108 dim 1 : vector<16x128xf32>, i32 -> vector<16x128xf32>
    %cst_109 = arith.constant 0.000000e+00 : f32
    %241 = vector.broadcast %cst_109 : f32 to vector<16x128xf32>
    %242 = arith.select %15, %240, %241 : vector<16x128xi1>, vector<16x128xf32>
    %c127_i32_110 = arith.constant 127 : i32
    %243 = tpu.dynamic_rotate %238 by %c127_i32_110 dim 1 : vector<16x128xf32>, i32 -> vector<16x128xf32>
    %cst_111 = arith.constant 0.000000e+00 : f32
    %244 = vector.broadcast %cst_111 : f32 to vector<16x128xf32>
    %245 = arith.select %11, %243, %244 : vector<16x128xi1>, vector<16x128xf32>
    %246 = arith.subf %242, %245 : vector<16x128xf32>
    %c1_i32_112 = arith.constant 1 : i32
    %247 = tpu.dynamic_rotate %239 by %c1_i32_112 dim 1 : vector<16x128xf32>, i32 -> vector<16x128xf32>
    %cst_113 = arith.constant 0.000000e+00 : f32
    %248 = vector.broadcast %cst_113 : f32 to vector<16x128xf32>
    %249 = arith.select %15, %247, %248 : vector<16x128xi1>, vector<16x128xf32>
    %cst_114 = arith.constant 2.000000e+00 : f32
    %250 = vector.broadcast %cst_114 : f32 to vector<16x128xf32>
    %251 = arith.mulf %250, %239 : vector<16x128xf32>
    %252 = arith.addf %249, %251 : vector<16x128xf32>
    %c127_i32_115 = arith.constant 127 : i32
    %253 = tpu.dynamic_rotate %239 by %c127_i32_115 dim 1 : vector<16x128xf32>, i32 -> vector<16x128xf32>
    %cst_116 = arith.constant 0.000000e+00 : f32
    %254 = vector.broadcast %cst_116 : f32 to vector<16x128xf32>
    %255 = arith.select %11, %253, %254 : vector<16x128xi1>, vector<16x128xf32>
    %256 = arith.addf %252, %255 : vector<16x128xf32>
    %257 = arith.mulf %246, %246 : vector<16x128xf32>
    %258 = arith.mulf %256, %256 : vector<16x128xf32>
    %259 = arith.addf %257, %258 : vector<16x128xf32>
    %260 = math.sqrt %259 : vector<16x128xf32>
    %261 = arith.addf %180, %260 : vector<16x128xf32>
    %262 = arith.addf %181, %246 : vector<16x128xf32>
    %263 = arith.addf %182, %256 : vector<16x128xf32>
    %c15_i32_117 = arith.constant 15 : i32
    %264 = tpu.dynamic_rotate %261 by %c15_i32_117 dim 0 : vector<16x128xf32>, i32 -> vector<16x128xf32>
    %c1_i32_118 = arith.constant 1 : i32
    %265 = tpu.dynamic_rotate %261 by %c1_i32_118 dim 0 : vector<16x128xf32>, i32 -> vector<16x128xf32>
    %cst_119 = arith.constant 0.000000e+00 : f32
    %266 = vector.broadcast %cst_119 : f32 to vector<16x128xf32>
    %267 = arith.select %3, %264, %266 : vector<16x128xi1>, vector<16x128xf32>
    %cst_120 = arith.constant 0.000000e+00 : f32
    %268 = vector.broadcast %cst_120 : f32 to vector<16x128xf32>
    %269 = arith.select %7, %265, %268 : vector<16x128xi1>, vector<16x128xf32>
    %270 = arith.maximumf %267, %269 : vector<16x128xf32>
    %c127_i32_121 = arith.constant 127 : i32
    %271 = tpu.dynamic_rotate %261 by %c127_i32_121 dim 1 : vector<16x128xf32>, i32 -> vector<16x128xf32>
    %cst_122 = arith.constant 0.000000e+00 : f32
    %272 = vector.broadcast %cst_122 : f32 to vector<16x128xf32>
    %273 = arith.select %11, %271, %272 : vector<16x128xi1>, vector<16x128xf32>
    %c1_i32_123 = arith.constant 1 : i32
    %274 = tpu.dynamic_rotate %261 by %c1_i32_123 dim 1 : vector<16x128xf32>, i32 -> vector<16x128xf32>
    %cst_124 = arith.constant 0.000000e+00 : f32
    %275 = vector.broadcast %cst_124 : f32 to vector<16x128xf32>
    %276 = arith.select %15, %274, %275 : vector<16x128xi1>, vector<16x128xf32>
    %277 = arith.maximumf %273, %276 : vector<16x128xf32>
    %278 = arith.andi %3, %11 : vector<16x128xi1>
    %c127_i32_125 = arith.constant 127 : i32
    %279 = tpu.dynamic_rotate %264 by %c127_i32_125 dim 1 : vector<16x128xf32>, i32 -> vector<16x128xf32>
    %cst_126 = arith.constant 0.000000e+00 : f32
    %280 = vector.broadcast %cst_126 : f32 to vector<16x128xf32>
    %281 = arith.select %278, %279, %280 : vector<16x128xi1>, vector<16x128xf32>
    %282 = arith.andi %7, %15 : vector<16x128xi1>
    %c1_i32_127 = arith.constant 1 : i32
    %283 = tpu.dynamic_rotate %265 by %c1_i32_127 dim 1 : vector<16x128xf32>, i32 -> vector<16x128xf32>
    %cst_128 = arith.constant 0.000000e+00 : f32
    %284 = vector.broadcast %cst_128 : f32 to vector<16x128xf32>
    %285 = arith.select %282, %283, %284 : vector<16x128xi1>, vector<16x128xf32>
    %286 = arith.maximumf %281, %285 : vector<16x128xf32>
    %287 = arith.andi %3, %15 : vector<16x128xi1>
    %c1_i32_129 = arith.constant 1 : i32
    %288 = tpu.dynamic_rotate %264 by %c1_i32_129 dim 1 : vector<16x128xf32>, i32 -> vector<16x128xf32>
    %cst_130 = arith.constant 0.000000e+00 : f32
    %289 = vector.broadcast %cst_130 : f32 to vector<16x128xf32>
    %290 = arith.select %287, %288, %289 : vector<16x128xi1>, vector<16x128xf32>
    %291 = arith.andi %7, %11 : vector<16x128xi1>
    %c127_i32_131 = arith.constant 127 : i32
    %292 = tpu.dynamic_rotate %265 by %c127_i32_131 dim 1 : vector<16x128xf32>, i32 -> vector<16x128xf32>
    %cst_132 = arith.constant 0.000000e+00 : f32
    %293 = vector.broadcast %cst_132 : f32 to vector<16x128xf32>
    %294 = arith.select %291, %292, %293 : vector<16x128xi1>, vector<16x128xf32>
    %295 = arith.maximumf %290, %294 : vector<16x128xf32>
    %296 = math.absf %262 : vector<16x128xf32>
    %297 = math.absf %263 : vector<16x128xf32>
    %cst_133 = arith.constant 0.414213568 : f32
    %298 = vector.broadcast %cst_133 : f32 to vector<16x128xf32>
    %299 = arith.mulf %298, %296 : vector<16x128xf32>
    %300 = arith.cmpf ole, %297, %299 : vector<16x128xf32>
    %cst_134 = arith.constant 2.41421366 : f32
    %301 = vector.broadcast %cst_134 : f32 to vector<16x128xf32>
    %302 = arith.mulf %301, %296 : vector<16x128xf32>
    %303 = arith.cmpf oge, %297, %302 : vector<16x128xf32>
    %cst_135 = arith.constant 0.000000e+00 : f32
    %304 = vector.broadcast %cst_135 : f32 to vector<16x128xf32>
    %305 = arith.cmpf oge, %262, %304 : vector<16x128xf32>
    %cst_136 = arith.constant 0.000000e+00 : f32
    %306 = vector.broadcast %cst_136 : f32 to vector<16x128xf32>
    %307 = arith.cmpf oge, %263, %306 : vector<16x128xf32>
    %308 = arith.xori %305, %307 : vector<16x128xi1>
    %cst_137 = arith.constant dense<true> : vector<16x128xi1>
    %309 = arith.xori %308, %cst_137 : vector<16x128xi1>
    %310 = arith.select %309, %286, %295 : vector<16x128xi1>, vector<16x128xf32>
    %311 = arith.select %303, %270, %310 : vector<16x128xi1>, vector<16x128xf32>
    %312 = arith.select %300, %277, %311 : vector<16x128xi1>, vector<16x128xf32>
    %313 = arith.cmpf ogt, %261, %312 : vector<16x128xf32>
    %cst_138 = arith.constant 0.000000e+00 : f32
    %314 = vector.broadcast %cst_138 : f32 to vector<16x128xf32>
    %315 = arith.select %313, %261, %314 : vector<16x128xi1>, vector<16x128xf32>
    %cst_139 = arith.constant 1.000000e+02 : f32
    %316 = vector.broadcast %cst_139 : f32 to vector<16x128xf32>
    %317 = arith.cmpf ogt, %315, %316 : vector<16x128xf32>
    %cst_140 = arith.constant 1.000000e+01 : f32
    %318 = vector.broadcast %cst_140 : f32 to vector<16x128xf32>
    %319 = arith.cmpf oge, %315, %318 : vector<16x128xf32>
    %cst_141 = arith.constant 1.000000e+02 : f32
    %320 = vector.broadcast %cst_141 : f32 to vector<16x128xf32>
    %321 = arith.cmpf ole, %315, %320 : vector<16x128xf32>
    %322 = arith.andi %319, %321 : vector<16x128xi1>
    %323 = arith.extui %317 : vector<16x128xi1> to vector<16x128xi32>
    %324 = arith.sitofp %323 : vector<16x128xi32> to vector<16x128xf32>
    %c15_i32_142 = arith.constant 15 : i32
    %325 = tpu.dynamic_rotate %324 by %c15_i32_142 dim 0 : vector<16x128xf32>, i32 -> vector<16x128xf32>
    %cst_143 = arith.constant 0.000000e+00 : f32
    %326 = vector.broadcast %cst_143 : f32 to vector<16x128xf32>
    %327 = arith.select %3, %325, %326 : vector<16x128xi1>, vector<16x128xf32>
    %328 = arith.addf %324, %327 : vector<16x128xf32>
    %c1_i32_144 = arith.constant 1 : i32
    %329 = tpu.dynamic_rotate %324 by %c1_i32_144 dim 0 : vector<16x128xf32>, i32 -> vector<16x128xf32>
    %cst_145 = arith.constant 0.000000e+00 : f32
    %330 = vector.broadcast %cst_145 : f32 to vector<16x128xf32>
    %331 = arith.select %7, %329, %330 : vector<16x128xi1>, vector<16x128xf32>
    %332 = arith.addf %328, %331 : vector<16x128xf32>
    %333 = arith.subf %332, %324 : vector<16x128xf32>
    %c127_i32_146 = arith.constant 127 : i32
    %334 = tpu.dynamic_rotate %332 by %c127_i32_146 dim 1 : vector<16x128xf32>, i32 -> vector<16x128xf32>
    %cst_147 = arith.constant 0.000000e+00 : f32
    %335 = vector.broadcast %cst_147 : f32 to vector<16x128xf32>
    %336 = arith.select %11, %334, %335 : vector<16x128xi1>, vector<16x128xf32>
    %337 = arith.addf %333, %336 : vector<16x128xf32>
    %c1_i32_148 = arith.constant 1 : i32
    %338 = tpu.dynamic_rotate %332 by %c1_i32_148 dim 1 : vector<16x128xf32>, i32 -> vector<16x128xf32>
    %cst_149 = arith.constant 0.000000e+00 : f32
    %339 = vector.broadcast %cst_149 : f32 to vector<16x128xf32>
    %340 = arith.select %15, %338, %339 : vector<16x128xi1>, vector<16x128xf32>
    %341 = arith.addf %337, %340 : vector<16x128xf32>
    %cst_150 = arith.constant 0.000000e+00 : f32
    %342 = vector.broadcast %cst_150 : f32 to vector<16x128xf32>
    %343 = arith.cmpf ogt, %341, %342 : vector<16x128xf32>
    %344 = arith.andi %322, %343 : vector<16x128xi1>
    %345 = arith.ori %317, %344 : vector<16x128xi1>
    %346 = arith.andi %7, %3 : vector<16x128xi1>
    %347 = arith.andi %346, %15 : vector<16x128xi1>
    %348 = arith.andi %347, %11 : vector<16x128xi1>
    %349 = arith.andi %345, %348 : vector<16x128xi1>
    %cst_151 = arith.constant 1.000000e+00 : f32
    %cst_152 = arith.constant 0.000000e+00 : f32
    %350 = vector.broadcast %cst_151 : f32 to vector<16x128xf32>
    %351 = vector.broadcast %cst_152 : f32 to vector<16x128xf32>
    %352 = arith.select %349, %350, %351 : vector<16x128xi1>, vector<16x128xf32>
    %353 = arith.truncf %352 : vector<16x128xf32> to vector<16x128xbf16>
    %c0_153 = arith.constant 0 : index
    %c0_154 = arith.constant 0 : index
    %354 = vector.load %arg2[%c0_153, %c0_154] : memref<16x128xbf16, #tpu.memory_space<vmem>>, vector<16x128xbf16>
    tpu.vector_store %arg2[%c0_153, %c0_154], %353 {strides = array<i32>} : memref<16x128xbf16, #tpu.memory_space<vmem>>, vector<16x128xbf16>,
    return
  }
  func.func @transform_0(%arg0: i32) -> (i32, i32, i32) {
    %c0_i32 = arith.constant 0 : i32
    %c0_i32_0 = arith.constant 0 : i32
    %c0_i32_1 = arith.constant 0 : i32
    return %c0_i32, %arg0, %c0_i32_0 : i32, i32, i32
  }
  func.func @transform_1(%arg0: i32) -> (i32, i32) {
    %c0_i32 = arith.constant 0 : i32
    %c0_i32_0 = arith.constant 0 : i32
    return %arg0, %c0_i32 : i32, i32
  }
}

</mosaic_0001>

<llo_original>
// kernel: tpu_custom_call.1
$region0: #{tpu_custom_call.1}
  #allocation0 [shape = 'u32[]', space=smem, size = 0x4, offset = 0x4, fixed_abs, tag = 'smem constant byte address 0x4 - core index']
  #allocation1 [shape = 'u32[144,128]{1,0:T(1,128)}', space=vmem, size = 0x12000, scoped, tag = 'internal scratch']
  #allocation6 [shape = 's32[]', space=sflag, size = 0x4, offset = 0, fixed_abs, tag = 'sflag constant byte address 0x0 - dummy sync flag']
  %s0 = inlined_call_operand.hbm [shape: f32[3,32,128], index: 0, kind: input, shape index: {}]
  %s1 = inlined_call_operand.hbm [shape: bf16[32,128], index: 1, kind: output, shape index: {}]
  %s2 = sld [smem:[#allocation0]]
  $region41: #{tpu_custom_call.1} parent=0
    _
  %s4 = ssub.s32 1, %s2
  %s5 = scalar_select 0, %s4, %s2
  $region1: #{tpu_custom_call.1} parent=0
    #allocation2 [shape = 'u8[49152]{0}', space=vmem, size = 0xc000, scoped, tag = 'input window, operand 0']
    #allocation3 [shape = 's32[2]{0}', space=sflag, size = 0x8, scoped, tag = 'scoped memory for tpu_custom_call.1']
    #allocation4 [shape = 's32[2]{0}', space=sflag, size = 0x8, scoped, tag = 'scoped memory for tpu_custom_call.1']
    #allocation5 [shape = 'u8[8192]{0}', space=vmem, size = 0x2000, scoped, tag = 'output window, operand 0']
    %6 = vsyncpa [#allocation3], 0
    %s7 = scalar_lea.sflag [#allocation3], 1
    %8 = vsyncpa %s7, 0
    %9 = vsyncpa [#allocation4], 0
    %s10 = scalar_lea.sflag [#allocation4], 1
    %11 = vsyncpa %s10, 0
    loop: start=0, step=1, limit=4
    $region2: #{tpu_custom_call.1} parent=1 // loop_pre_header
      _
    $region3: #{tpu_custom_call.1} parent=1 // loop_header
      %s13 = sphi 0, %s17
      %p14 = scmp.ge.s32.totalorder %s13, 4
      %s23 = sphi 0, %s25
      %s26 = sphi 0, %s23
      %s27 = sphi 0, %s26
      %s43 = sphi 0, %s27
      %s49 = sphi 0, %s51
      %s52 = sphi 0, %s49
      %s53 = sphi 0, %s52
      %s69 = sphi 0, %s53
    $region4: #{tpu_custom_call.1} parent=1 // loop_header_branch
      %16 = sbr.rel (%p14) target = $region8
    $region5: #{tpu_custom_call.1} parent=1 // loop_body
      %s18 = ssub.s32 %s13, 1
      %s19 = ssub.s32 %s13, 2
      %s20 = sadd.s32 %s13, 1
      %s21 = ssub.s32 %s13, %s20
      %p22 = scmp.eq.s32.totalorder %s21, 0
      %s24 = sadd.s32 %s23, 1
      %s25 = scalar_select %p22, %s23, %s24
      %p28 = pneg %p22
      %p29 = scmp.eq.s32.totalorder %s13, 1
      %p30 = por %p28, %p29
      %p31 = scmp.ne.s32.totalorder %s23, %s26
      %p32 = scmp.eq.s32.totalorder %s13, 0
      %p33 = por %p31, %p32
      %p34 = scmp.ne.s32.totalorder %s23, %s26
      %p35 = scmp.eq.s32.totalorder %s18, 1
      %p36 = por %p34, %p35
      %p37 = scmp.ne.s32.totalorder %s26, %s27
      %p38 = scmp.eq.s32.totalorder %s18, 0
      %p39 = por %p37, %p38
      %p40 = scmp.ne.s32.totalorder %s26, %s27
      %p41 = scmp.eq.s32.totalorder %s19, 1
      %p42 = por %p40, %p41
      %p44 = scmp.ne.s32.totalorder %s27, %s43
      %p45 = scmp.eq.s32.totalorder %s19, 0
      %p46 = por %p44, %p45
      %s47 = ssub.s32 %s13, %s20
      %p48 = scmp.eq.s32.totalorder %s47, 0
      %s50 = sadd.s32 %s49, 1
      %s51 = scalar_select %p48, %s49, %s50
      %p54 = pneg %p48
      %p55 = scmp.eq.s32.totalorder %s13, 1
      %p56 = por %p54, %p55
      %p57 = scmp.ne.s32.totalorder %s49, %s52
      %p58 = scmp.eq.s32.totalorder %s13, 0
      %p59 = por %p57, %p58
      %p60 = scmp.ne.s32.totalorder %s49, %s52
      %p61 = scmp.eq.s32.totalorder %s18, 1
      %p62 = por %p60, %p61
      %p63 = scmp.ne.s32.totalorder %s52, %s53
      %p64 = scmp.eq.s32.totalorder %s18, 0
      %p65 = por %p63, %p64
      %p66 = scmp.ne.s32.totalorder %s52, %s53
      %p67 = scmp.eq.s32.totalorder %s19, 1
      %p68 = por %p66, %p67
      %p70 = scmp.ne.s32.totalorder %s53, %s69
      %p71 = scmp.eq.s32.totalorder %s19, 0
      %p72 = por %p70, %p71
      %p73 = scmp.le.s32.totalorder 1, %s13
      %p74 = scmp.lt.s32.totalorder %s13, 3
      %p75 = pnand %p73, %p74
      %p76 = pneg %p75
      // Predicated region
      $region9: #{tpu_custom_call.1} parent=5 // pred_check
        _
      $region10: #{tpu_custom_call.1} parent=5 // pred_check_branch
        %78 = sbr.rel (%p75) target = $region12
      $region11: #{tpu_custom_call.1} parent=5 // pred_region
        %s79 = ssub.s32 %s13, 1
      $region12: #{tpu_custom_call.1} parent=5 // pred_fallthru
        _
      %p80 = scmp.lt.s32.totalorder %s13, 2
      // Predicated region
      $region13: #{tpu_custom_call.1} parent=5 // pred_check
        %p81 = pneg %p80
      $region14: #{tpu_custom_call.1} parent=5 // pred_check_branch
        %83 = sbr.rel (%p81) target = $region16
      $region15: #{tpu_custom_call.1} parent=5 // pred_region
        // Predicated region
        $region17: #{tpu_custom_call.1} parent=15 // pred_check
          %p84 = pneg %p33
        $region18: #{tpu_custom_call.1} parent=15 // pred_check_branch
          %86 = sbr.rel (%p84) target = $region20
        $region19: #{tpu_custom_call.1} parent=15 // pred_region
          #allocation7 [shape = 'u32[6]{0}', space=smem, size = 0x18, scoped, tag = 'DMA stride descriptor']
          %s87 = sand.u32 %s23, 1
          %s88 = scalar_lea.sflag [#allocation3], %s87
          %s89 = sand.u32 %s23, 1
          %s90 = smul.addr %s89, 48
          %s91 = scalar_lea.vmem [#allocation2], %s90
          %s92 = smul.u32 2, %s13
          %s94 = ssub.s32 768, 768
          %95 = vsyncadd %s88, %s94
          %s96 = smul.addr %s92, 128
          %s97 = scalar_lea.hbm %s0, %s96
          %s99 = sshll.u32 1, 14
          %s100 = sxor.u32 4294967295, %s99
          %s102 = sld [smem:[#allocation0]]
          %s103 = sadd.s32 2, %s102
          %s105 = sshll.u32 7, 26
          %s106 = sxor.u32 4294967295, %s105
          %s107 = sand.u32 0, %s106
          %s108 = sshll.u32 %s103, 26
          %s109 = sor.u32 %s107, %s108
          %s110 = sshll.u32 %s91, 4
          %s111 = int_to_ptr.vmem [resolvable:$true] %s110
          %117 = sst [smem:[#allocation7]] 512
          %s118 = scalar_lea.smem [#allocation7], 1
          %119 = sst [smem:[%s118]] 256
          %s120 = scalar_lea.smem [#allocation7], 2
          %121 = sst [smem:[%s120]] 2
          %s122 = scalar_lea.smem [#allocation7], 3
          %123 = sst [smem:[%s122]] 128
          %s124 = scalar_lea.smem [#allocation7], 4
          %125 = sst [smem:[%s124]] 128
          %s126 = scalar_lea.smem [#allocation7], 5
          %127 = sst [smem:[%s126]] 8
          %129 = dma.general %s97, 768, %s111, %s88, 131072, [#allocation7], %s109, 0
        $region20: #{tpu_custom_call.1} parent=15 // pred_fallthru
          _
      $region16: #{tpu_custom_call.1} parent=5 // pred_fallthru
        _
      %p130 = scmp.le.s32.totalorder 1, %s13
      %p131 = scmp.lt.s32.totalorder %s13, 3
      %p132 = pnand %p130, %p131
      %p133 = pneg %p132
      // Predicated region
      $region21: #{tpu_custom_call.1} parent=5 // pred_check
        _
      $region22: #{tpu_custom_call.1} parent=5 // pred_check_branch
        %135 = sbr.rel (%p132) target = $region24
      $region23: #{tpu_custom_call.1} parent=5 // pred_region
        %s136 = ssub.s32 %s13, 1
        %s137 = sand.u32 %s26, 1
        %s138 = scalar_lea.sflag [#allocation3], %s137
        %s139 = sand.u32 %s26, 1
        %s140 = smul.addr %s139, 48
        %s141 = scalar_lea.vmem [#allocation2], %s140
        // Predicated region
        $region25: #{tpu_custom_call.1} parent=23 // pred_check
          %p142 = pneg %p39
        $region26: #{tpu_custom_call.1} parent=23 // pred_check_branch
          %144 = sbr.rel (%p142) target = $region28
        $region27: #{tpu_custom_call.1} parent=23 // pred_region
          %145 = dma.done %s138, 768
        $region28: #{tpu_custom_call.1} parent=23 // pred_fallthru
          _
        %s146 = sand.u32 %s26, 1
        %s147 = scalar_lea.sflag [#allocation3], %s146
        %s148 = sand.u32 %s26, 1
        %s149 = smul.addr %s148, 48
        %s150 = scalar_lea.vmem [#allocation2], %s149
        %p151 = pneg %p39
        %p152 = pneg %p36
        %p153 = pneg %p65
        %p154 = pneg %p62
        %s155 = sand.u32 %s52, 1
        %s156 = scalar_lea.sflag [#allocation4], %s155
        %s157 = sand.u32 %s52, 1
        %s158 = smul.addr %s157, 8
        %s159 = scalar_lea.vmem [#allocation5], %s158
        %s160 = smul.u32 2, %s18
        %s161 = smul.u32 2, %s18
        %v162 = vlaneseq
        %v163 = vshrl.u32 %v162, 7
        %v164 = vadd.s32 %v163, 8
        %v165 = vlaneseq
        %v166 = vand.u32 %v165, 127
        %vm167 = vcmp.le.s32.totalorder %v163, 14
        %vm168 = vcmp.le.s32.totalorder %v164, 14
        %vm169 = vcmp.le.s32.totalorder %v163, 13
        %vm170 = vcmp.le.s32.totalorder %v164, 13
        %vm171 = vcmp.ge.s32.totalorder %v163, 1
        %vm172 = vcmp.ge.s32.totalorder %v164, 1
        %vm173 = vcmp.ge.s32.totalorder %v163, 2
        %vm174 = vcmp.ge.s32.totalorder %v164, 2
        %vm175 = vcmp.le.s32.totalorder %v166, 14
        %vm176 = vcmp.le.s32.totalorder %v166, 13
        %vm177 = vcmp.ge.s32.totalorder %v166, 1
        %vm178 = vcmp.ge.s32.totalorder %v166, 2
        %v179 = vld [vmem:[%s141] sm:$0xff]
        %v180 = vld [vmem:[%s141 + $0x8] sm:$0xff]
        %181 = vrot.lane.b32.xlu0 %v179, 1
        %v182 = vpop.permute.xlu0 %181
        %183 = vrot.lane.b32.xlu0 %v180, 1
        %v184 = vpop.permute.xlu0 %183
        %v185 = vsel %vm177, %v182, 0.0
        %v186 = vsel %vm177, %v184, 0.0
        %187 = vrot.lane.b32.xlu0 %v179, 127
        %v188 = vpop.permute.xlu0 %187
        %189 = vrot.lane.b32.xlu0 %v180, 127
        %v190 = vpop.permute.xlu0 %189
        %v191 = vsel %vm175, %v188, 0.0
        %v192 = vsel %vm175, %v190, 0.0
        %v193 = vadd.f32 %v185, %v191
        %v194 = vadd.f32 %v186, %v192
        %v195 = vmul.f32 %v193, 0.60653067
        %v196 = vmul.f32 %v194, 0.60653067
        %v197 = vadd.f32 %v179, %v195
        %v198 = vadd.f32 %v180, %v196
        %199 = vrot.lane.b32.xlu0 %v179, 2
        %v200 = vpop.permute.xlu0 %199
        %201 = vrot.lane.b32.xlu0 %v180, 2
        %v202 = vpop.permute.xlu0 %201
        %v203 = vsel %vm178, %v200, 0.0
        %v204 = vsel %vm178, %v202, 0.0
        %205 = vrot.lane.b32.xlu0 %v179, 126
        %v206 = vpop.permute.xlu0 %205
        %207 = vrot.lane.b32.xlu0 %v180, 126
        %v208 = vpop.permute.xlu0 %207
        %v209 = vsel %vm176, %v206, 0.0
        %v210 = vsel %vm176, %v208, 0.0
        %v211 = vadd.f32 %v203, %v209
        %v212 = vadd.f32 %v204, %v210
        %v213 = vmul.f32 %v211, 0.13533528
        %v214 = vmul.f32 %v212, 0.13533528
        %v215 = vadd.f32 %v197, %v213
        %v216 = vadd.f32 %v198, %v214
        %v217 = vrot.slane %v215, 7
        %v218 = vrot.slane %v216, 7
        %vm219 = vcmp.lt.s32.totalorder %v163, 1
        %v220 = vsel %vm219, %v217, %v218
        %v221 = vsel %vm219, %v218, %v217
        %v222 = vsel %vm171, %v221, 0.0
        %v223 = vsel %vm172, %v220, 0.0
        %v224 = vrot.slane %v215, 1
        %v225 = vrot.slane %v216, 1
        %vm226 = vcmp.lt.s32.totalorder %v163, 7
        %v227 = vsel %vm226, %v224, %v225
        %v228 = vsel %vm226, %v225, %v224
        %v229 = vsel %vm167, %v227, 0.0
        %v230 = vsel %vm168, %v228, 0.0
        %v231 = vadd.f32 %v222, %v229
        %v232 = vadd.f32 %v223, %v230
        %v233 = vmul.f32 %v231, 0.60653067
        %v234 = vmul.f32 %v232, 0.60653067
        %v235 = vadd.f32 %v215, %v233
        %v236 = vadd.f32 %v216, %v234
        %v237 = vrot.slane %v215, 6
        %v238 = vrot.slane %v216, 6
        %vm239 = vcmp.lt.s32.totalorder %v163, 2
        %v240 = vsel %vm239, %v237, %v238
        %v241 = vsel %vm239, %v238, %v237
        %v242 = vsel %vm173, %v241, 0.0
        %v243 = vsel %vm174, %v240, 0.0
        %v244 = vrot.slane %v215, 2
        %v245 = vrot.slane %v216, 2
        %vm246 = vcmp.lt.s32.totalorder %v163, 6
        %v247 = vsel %vm246, %v244, %v245
        %v248 = vsel %vm246, %v245, %v244
        %v249 = vsel %vm169, %v247, 0.0
        %v250 = vsel %vm170, %v248, 0.0
        %v251 = vadd.f32 %v242, %v249
        %v252 = vadd.f32 %v243, %v250
        %v253 = vmul.f32 %v251, 0.13533528
        %v254 = vmul.f32 %v252, 0.13533528
        %v255 = vadd.f32 %v235, %v253
        %v256 = vadd.f32 %v236, %v254
        %v257 = vrot.slane %v255, 7
        %v258 = vrot.slane %v256, 7
        %v259 = vsel %vm219, %v257, %v258
        %v260 = vsel %vm219, %v258, %v257
        %v261 = vsel %vm171, %v260, 0.0
        %v262 = vsel %vm172, %v259, 0.0
        %v263 = vrot.slane %v255, 1
        %v264 = vrot.slane %v256, 1
        %v265 = vsel %vm226, %v263, %v264
        %v266 = vsel %vm226, %v264, %v263
        %v267 = vsel %vm167, %v265, 0.0
        %v268 = vsel %vm168, %v266, 0.0
        %v269 = vmul.f32 %v255, 2.0
        %v270 = vmul.f32 %v256, 2.0
        %v271 = vadd.f32 %v261, %v269
        %v272 = vadd.f32 %v262, %v270
        %v273 = vadd.f32 %v271, %v267
        %v274 = vadd.f32 %v272, %v268
        %v275 = vsub.f32 %v261, %v267
        %v276 = vsub.f32 %v262, %v268
        %277 = vrot.lane.b32.xlu0 %v273, 1
        %v278 = vpop.permute.xlu0 %277
        %279 = vrot.lane.b32.xlu0 %v274, 1
        %v280 = vpop.permute.xlu0 %279
        %v281 = vsel %vm177, %v278, 0.0
        %v282 = vsel %vm177, %v280, 0.0
        %283 = vrot.lane.b32.xlu0 %v273, 127
        %v284 = vpop.permute.xlu0 %283
        %285 = vrot.lane.b32.xlu0 %v274, 127
        %v286 = vpop.permute.xlu0 %285
        %v287 = vsel %vm175, %v284, 0.0
        %v288 = vsel %vm175, %v286, 0.0
        %v289 = vsub.f32 %v281, %v287
        %v290 = vsub.f32 %v282, %v288
        %291 = vrot.lane.b32.xlu0 %v275, 1
        %v292 = vpop.permute.xlu0 %291
        %293 = vrot.lane.b32.xlu0 %v276, 1
        %v294 = vpop.permute.xlu0 %293
        %v295 = vsel %vm177, %v292, 0.0
        %v296 = vsel %vm177, %v294, 0.0
        %v297 = vmul.f32 %v275, 2.0
        %v298 = vmul.f32 %v276, 2.0
        %v299 = vadd.f32 %v295, %v297
        %v300 = vadd.f32 %v296, %v298
        %301 = vrot.lane.b32.xlu0 %v275, 127
        %v302 = vpop.permute.xlu0 %301
        %303 = vrot.lane.b32.xlu0 %v276, 127
        %v304 = vpop.permute.xlu0 %303
        %v305 = vsel %vm175, %v302, 0.0
        %v306 = vsel %vm175, %v304, 0.0
        %v307 = vadd.f32 %v299, %v305
        %v308 = vadd.f32 %v300, %v306
        %v309 = vmul.f32 %v289, %v289
        %v310 = vmul.f32 %v290, %v290
        %v311 = vmul.f32 %v307, %v307
        %v312 = vmul.f32 %v308, %v308
        %v313 = vadd.f32 %v309, %v311
        %v314 = vadd.f32 %v310, %v312
        %v315 = vrsqrt.pop %v313
        %v316 = vmul.f32 %v313, %v315
        %vm317 = vcmp.eq.f32.partialorder %v313, inf
        %v318 = vsel %vm317, %v313, %v316
        %vm319 = vcmp.eq.f32.partialorder %v313, 0.0
        %v320 = vand.u32 %v313, 2147483648
        %v321 = vsel %vm319, %v320, %v318
        %v322 = vrsqrt.pop %v314
        %v323 = vmul.f32 %v314, %v322
        %vm324 = vcmp.eq.f32.partialorder %v314, inf
        %v325 = vsel %vm324, %v314, %v323
        %vm326 = vcmp.eq.f32.partialorder %v314, 0.0
        %v327 = vand.u32 %v314, 2147483648
        %v328 = vsel %vm326, %v327, %v325
        %v329 = vadd.f32 %v321, 0.0
        %v330 = vadd.f32 %v328, 0.0
        %v331 = vadd.f32 %v289, 0.0
        %v332 = vadd.f32 %v290, 0.0
        %v333 = vadd.f32 %v307, 0.0
        %v334 = vadd.f32 %v308, 0.0
        %s335 = scalar_lea.vmem %s141, 16 [#allocation2]
        %v336 = vld [vmem:[%s335] sm:$0xff]
        %v337 = vld [vmem:[%s335 + $0x8] sm:$0xff]
        %338 = vrot.lane.b32.xlu0 %v336, 1
        %v339 = vpop.permute.xlu0 %338
        %340 = vrot.lane.b32.xlu0 %v337, 1
        %v341 = vpop.permute.xlu0 %340
        %v342 = vsel %vm177, %v339, 0.0
        %v343 = vsel %vm177, %v341, 0.0
        %344 = vrot.lane.b32.xlu0 %v336, 127
        %v345 = vpop.permute.xlu0 %344
        %346 = vrot.lane.b32.xlu0 %v337, 127
        %v347 = vpop.permute.xlu0 %346
        %v348 = vsel %vm175, %v345, 0.0
        %v349 = vsel %vm175, %v347, 0.0
        %v350 = vadd.f32 %v342, %v348
        %v351 = vadd.f32 %v343, %v349
        %v352 = vmul.f32 %v350, 0.60653067
        %v353 = vmul.f32 %v351, 0.60653067
        %v354 = vadd.f32 %v336, %v352
        %v355 = vadd.f32 %v337, %v353
        %356 = vrot.lane.b32.xlu0 %v336, 2
        %v357 = vpop.permute.xlu0 %356
        %358 = vrot.lane.b32.xlu0 %v337, 2
        %v359 = vpop.permute.xlu0 %358
        %v360 = vsel %vm178, %v357, 0.0
        %v361 = vsel %vm178, %v359, 0.0
        %362 = vrot.lane.b32.xlu0 %v336, 126
        %v363 = vpop.permute.xlu0 %362
        %364 = vrot.lane.b32.xlu0 %v337, 126
        %v365 = vpop.permute.xlu0 %364
        %v366 = vsel %vm176, %v363, 0.0
        %v367 = vsel %vm176, %v365, 0.0
        %v368 = vadd.f32 %v360, %v366
        %v369 = vadd.f32 %v361, %v367
        %v370 = vmul.f32 %v368, 0.13533528
        %v371 = vmul.f32 %v369, 0.13533528
        %v372 = vadd.f32 %v354, %v370
        %v373 = vadd.f32 %v355, %v371
        %v374 = vrot.slane %v372, 7
        %v375 = vrot.slane %v373, 7
        %v376 = vsel %vm219, %v374, %v375
        %v377 = vsel %vm219, %v375, %v374
        %v378 = vsel %vm171, %v377, 0.0
        %v379 = vsel %vm172, %v376, 0.0
        %v380 = vrot.slane %v372, 1
        %v381 = vrot.slane %v373, 1
        %v382 = vsel %vm226, %v380, %v381
        %v383 = vsel %vm226, %v381, %v380
        %v384 = vsel %vm167, %v382, 0.0
        %v385 = vsel %vm168, %v383, 0.0
        %v386 = vadd.f32 %v378, %v384
        %v387 = vadd.f32 %v379, %v385
        %v388 = vmul.f32 %v386, 0.60653067
        %v389 = vmul.f32 %v387, 0.60653067
        %v390 = vadd.f32 %v372, %v388
        %v391 = vadd.f32 %v373, %v389
        %v392 = vrot.slane %v372, 6
        %v393 = vrot.slane %v373, 6
        %v394 = vsel %vm239, %v392, %v393
        %v395 = vsel %vm239, %v393, %v392
        %v396 = vsel %vm173, %v395, 0.0
        %v397 = vsel %vm174, %v394, 0.0
        %v398 = vrot.slane %v372, 2
        %v399 = vrot.slane %v373, 2
        %v400 = vsel %vm246, %v398, %v399
        %v401 = vsel %vm246, %v399, %v398
        %v402 = vsel %vm169, %v400, 0.0
        %v403 = vsel %vm170, %v401, 0.0
        %v404 = vadd.f32 %v396, %v402
        %v405 = vadd.f32 %v397, %v403
        %v406 = vmul.f32 %v404, 0.13533528
        %v407 = vmul.f32 %v405, 0.13533528
        %v408 = vadd.f32 %v390, %v406
        %v409 = vadd.f32 %v391, %v407
        %v410 = vrot.slane %v408, 7
        %v411 = vrot.slane %v409, 7
        %v412 = vsel %vm219, %v410, %v411
        %v413 = vsel %vm219, %v411, %v410
        %v414 = vsel %vm171, %v413, 0.0
        %v415 = vsel %vm172, %v412, 0.0
        %v416 = vrot.slane %v408, 1
        %v417 = vrot.slane %v409, 1
        %v418 = vsel %vm226, %v416, %v417
        %v419 = vsel %vm226, %v417, %v416
        %v420 = vsel %vm167, %v418, 0.0
        %v421 = vsel %vm168, %v419, 0.0
        %v422 = vmul.f32 %v408, 2.0
        %v423 = vmul.f32 %v409, 2.0
        %v424 = vadd.f32 %v414, %v422
        %v425 = vadd.f32 %v415, %v423
        %v426 = vadd.f32 %v424, %v420
        %v427 = vadd.f32 %v425, %v421
        %v428 = vsub.f32 %v414, %v420
        %v429 = vsub.f32 %v415, %v421
        %430 = vrot.lane.b32.xlu0 %v426, 1
        %v431 = vpop.permute.xlu0 %430
        %432 = vrot.lane.b32.xlu0 %v427, 1
        %v433 = vpop.permute.xlu0 %432
        %v434 = vsel %vm177, %v431, 0.0
        %v435 = vsel %vm177, %v433, 0.0
        %436 = vrot.lane.b32.xlu0 %v426, 127
        %v437 = vpop.permute.xlu0 %436
        %438 = vrot.lane.b32.xlu0 %v427, 127
        %v439 = vpop.permute.xlu0 %438
        %v440 = vsel %vm175, %v437, 0.0
        %v441 = vsel %vm175, %v439, 0.0
        %v442 = vsub.f32 %v434, %v440
        %v443 = vsub.f32 %v435, %v441
        %444 = vrot.lane.b32.xlu0 %v428, 1
        %v445 = vpop.permute.xlu0 %444
        %446 = vrot.lane.b32.xlu0 %v429, 1
        %v447 = vpop.permute.xlu0 %446
        %v448 = vsel %vm177, %v445, 0.0
        %v449 = vsel %vm177, %v447, 0.0
        %v450 = vmul.f32 %v428, 2.0
        %v451 = vmul.f32 %v429, 2.0
        %v452 = vadd.f32 %v448, %v450
        %v453 = vadd.f32 %v449, %v451
        %454 = vrot.lane.b32.xlu0 %v428, 127
        %v455 = vpop.permute.xlu0 %454
        %456 = vrot.lane.b32.xlu0 %v429, 127
        %v457 = vpop.permute.xlu0 %456
        %v458 = vsel %vm175, %v455, 0.0
        %v459 = vsel %vm175, %v457, 0.0
        %v460 = vadd.f32 %v452, %v458
        %v461 = vadd.f32 %v453, %v459
        %v462 = vmul.f32 %v442, %v442
        %v463 = vmul.f32 %v443, %v443
        %v464 = vmul.f32 %v460, %v460
        %v465 = vmul.f32 %v461, %v461
        %v466 = vadd.f32 %v462, %v464
        %v467 = vadd.f32 %v463, %v465
        %v468 = vrsqrt.pop %v466
        %v469 = vmul.f32 %v466, %v468
        %vm470 = vcmp.eq.f32.partialorder %v466, inf
        %v471 = vsel %vm470, %v466, %v469
        %vm472 = vcmp.eq.f32.partialorder %v466, 0.0
        %v473 = vand.u32 %v466, 2147483648
        %v474 = vsel %vm472, %v473, %v471
        %v475 = vrsqrt.pop %v467
        %v476 = vmul.f32 %v467, %v475
        %vm477 = vcmp.eq.f32.partialorder %v467, inf
        %v478 = vsel %vm477, %v467, %v476
        %vm479 = vcmp.eq.f32.partialorder %v467, 0.0
        %v480 = vand.u32 %v467, 2147483648
        %v481 = vsel %vm479, %v480, %v478
        %v482 = vadd.f32 %v329, %v474
        %v483 = vadd.f32 %v330, %v481
        %v484 = vadd.f32 %v331, %v442
        %v485 = vadd.f32 %v332, %v443
        %v486 = vadd.f32 %v333, %v460
        %v487 = vadd.f32 %v334, %v461
        %s488 = scalar_lea.vmem %s141, 32 [#allocation2]
        %v489 = vld [vmem:[%s488] sm:$0xff]
        %v490 = vld [vmem:[%s488 + $0x8] sm:$0xff]
        %491 = vrot.lane.b32.xlu0 %v489, 1
        %v492 = vpop.permute.xlu0 %491
        %493 = vrot.lane.b32.xlu0 %v490, 1
        %v494 = vpop.permute.xlu0 %493
        %v495 = vsel %vm177, %v492, 0.0
        %v496 = vsel %vm177, %v494, 0.0
        %497 = vrot.lane.b32.xlu0 %v489, 127
        %v498 = vpop.permute.xlu0 %497
        %499 = vrot.lane.b32.xlu0 %v490, 127
        %v500 = vpop.permute.xlu0 %499
        %v501 = vsel %vm175, %v498, 0.0
        %v502 = vsel %vm175, %v500, 0.0
        %v503 = vadd.f32 %v495, %v501
        %v504 = vadd.f32 %v496, %v502
        %v505 = vmul.f32 %v503, 0.60653067
        %v506 = vmul.f32 %v504, 0.60653067
        %v507 = vadd.f32 %v489, %v505
        %v508 = vadd.f32 %v490, %v506
        %509 = vrot.lane.b32.xlu0 %v489, 2
        %v510 = vpop.permute.xlu0 %509
        %511 = vrot.lane.b32.xlu0 %v490, 2
        %v512 = vpop.permute.xlu0 %511
        %v513 = vsel %vm178, %v510, 0.0
        %v514 = vsel %vm178, %v512, 0.0
        %515 = vrot.lane.b32.xlu0 %v489, 126
        %v516 = vpop.permute.xlu0 %515
        %517 = vrot.lane.b32.xlu0 %v490, 126
        %v518 = vpop.permute.xlu0 %517
        %v519 = vsel %vm176, %v516, 0.0
        %v520 = vsel %vm176, %v518, 0.0
        %v521 = vadd.f32 %v513, %v519
        %v522 = vadd.f32 %v514, %v520
        %v523 = vmul.f32 %v521, 0.13533528
        %v524 = vmul.f32 %v522, 0.13533528
        %v525 = vadd.f32 %v507, %v523
        %v526 = vadd.f32 %v508, %v524
        %v527 = vrot.slane %v525, 7
        %v528 = vrot.slane %v526, 7
        %v529 = vsel %vm219, %v527, %v528
        %v530 = vsel %vm219, %v528, %v527
        %v531 = vsel %vm171, %v530, 0.0
        %v532 = vsel %vm172, %v529, 0.0
        %v533 = vrot.slane %v525, 1
        %v534 = vrot.slane %v526, 1
        %v535 = vsel %vm226, %v533, %v534
        %v536 = vsel %vm226, %v534, %v533
        %v537 = vsel %vm167, %v535, 0.0
        %v538 = vsel %vm168, %v536, 0.0
        %v539 = vadd.f32 %v531, %v537
        %v540 = vadd.f32 %v532, %v538
        %v541 = vmul.f32 %v539, 0.60653067
        %v542 = vmul.f32 %v540, 0.60653067
        %v543 = vadd.f32 %v525, %v541
        %v544 = vadd.f32 %v526, %v542
        %v545 = vrot.slane %v525, 6
        %v546 = vrot.slane %v526, 6
        %v547 = vsel %vm239, %v545, %v546
        %v548 = vsel %vm239, %v546, %v545
        %v549 = vsel %vm173, %v548, 0.0
        %v550 = vsel %vm174, %v547, 0.0
        %v551 = vrot.slane %v525, 2
        %v552 = vrot.slane %v526, 2
        %v553 = vsel %vm246, %v551, %v552
        %v554 = vsel %vm246, %v552, %v551
        %v555 = vsel %vm169, %v553, 0.0
        %v556 = vsel %vm170, %v554, 0.0
        %v557 = vadd.f32 %v549, %v555
        %v558 = vadd.f32 %v550, %v556
        %v559 = vmul.f32 %v557, 0.13533528
        %v560 = vmul.f32 %v558, 0.13533528
        %v561 = vadd.f32 %v543, %v559
        %v562 = vadd.f32 %v544, %v560
        %v563 = vrot.slane %v561, 7
        %v564 = vrot.slane %v562, 7
        %v565 = vsel %vm219, %v563, %v564
        %v566 = vsel %vm219, %v564, %v563
        %v567 = vsel %vm171, %v566, 0.0
        %v568 = vsel %vm172, %v565, 0.0
        %v569 = vrot.slane %v561, 1
        %v570 = vrot.slane %v562, 1
        %v571 = vsel %vm226, %v569, %v570
        %v572 = vsel %vm226, %v570, %v569
        %v573 = vsel %vm167, %v571, 0.0
        %v574 = vsel %vm168, %v572, 0.0
        %v575 = vmul.f32 %v561, 2.0
        %v576 = vmul.f32 %v562, 2.0
        %v577 = vadd.f32 %v567, %v575
        %v578 = vadd.f32 %v568, %v576
        %v579 = vadd.f32 %v577, %v573
        %v580 = vadd.f32 %v578, %v574
        %v581 = vsub.f32 %v567, %v573
        %v582 = vsub.f32 %v568, %v574
        %583 = vrot.lane.b32.xlu0 %v579, 1
        %v584 = vpop.permute.xlu0 %583
        %585 = vrot.lane.b32.xlu0 %v580, 1
        %v586 = vpop.permute.xlu0 %585
        %v587 = vsel %vm177, %v584, 0.0
        %v588 = vsel %vm177, %v586, 0.0
        %589 = vrot.lane.b32.xlu0 %v579, 127
        %v590 = vpop.permute.xlu0 %589
        %591 = vrot.lane.b32.xlu0 %v580, 127
        %v592 = vpop.permute.xlu0 %591
        %v593 = vsel %vm175, %v590, 0.0
        %v594 = vsel %vm175, %v592, 0.0
        %v595 = vsub.f32 %v587, %v593
        %v596 = vsub.f32 %v588, %v594
        %597 = vrot.lane.b32.xlu0 %v581, 1
        %v598 = vpop.permute.xlu0 %597
        %599 = vrot.lane.b32.xlu0 %v582, 1
        %v600 = vpop.permute.xlu0 %599
        %v601 = vsel %vm177, %v598, 0.0
        %v602 = vsel %vm177, %v600, 0.0
        %v603 = vmul.f32 %v581, 2.0
        %v604 = vmul.f32 %v582, 2.0
        %v605 = vadd.f32 %v601, %v603
        %v606 = vadd.f32 %v602, %v604
        %607 = vrot.lane.b32.xlu0 %v581, 127
        %v608 = vpop.permute.xlu0 %607
        %609 = vrot.lane.b32.xlu0 %v582, 127
        %v610 = vpop.permute.xlu0 %609
        %v611 = vsel %vm175, %v608, 0.0
        %v612 = vsel %vm175, %v610, 0.0
        %v613 = vadd.f32 %v605, %v611
        %v614 = vadd.f32 %v606, %v612
        %v615 = vmul.f32 %v595, %v595
        %v616 = vmul.f32 %v596, %v596
        %v617 = vmul.f32 %v613, %v613
        %v618 = vmul.f32 %v614, %v614
        %v619 = vadd.f32 %v615, %v617
        %v620 = vadd.f32 %v616, %v618
        %v621 = vrsqrt.pop %v619
        %v622 = vmul.f32 %v619, %v621
        %vm623 = vcmp.eq.f32.partialorder %v619, inf
        %v624 = vsel %vm623, %v619, %v622
        %vm625 = vcmp.eq.f32.partialorder %v619, 0.0
        %v626 = vand.u32 %v619, 2147483648
        %v627 = vsel %vm625, %v626, %v624
        %v628 = vrsqrt.pop %v620
        %v629 = vmul.f32 %v620, %v628
        %vm630 = vcmp.eq.f32.partialorder %v620, inf
        %v631 = vsel %vm630, %v620, %v629
        %vm632 = vcmp.eq.f32.partialorder %v620, 0.0
        %v633 = vand.u32 %v620, 2147483648
        %v634 = vsel %vm632, %v633, %v631
        %v635 = vadd.f32 %v482, %v627
        %v636 = vadd.f32 %v483, %v634
        %v637 = vadd.f32 %v484, %v595
        %v638 = vadd.f32 %v485, %v596
        %v639 = vadd.f32 %v486, %v613
        %v640 = vadd.f32 %v487, %v614
        %v641 = vrot.slane %v635, 1
        %v642 = vrot.slane %v636, 1
        %v643 = vsel %vm226, %v641, %v642
        %v644 = vsel %vm226, %v642, %v641
        %v645 = vrot.slane %v635, 7
        %v646 = vrot.slane %v636, 7
        %v647 = vsel %vm219, %v645, %v646
        %v648 = vsel %vm219, %v646, %v645
        %v649 = vsel %vm167, %v643, 0.0
        %v650 = vsel %vm168, %v644, 0.0
        %v651 = vsel %vm171, %v648, 0.0
        %v652 = vsel %vm172, %v647, 0.0
        %v653 = vmax.f32 %v649, %v651
        %v654 = vmax.f32 %v650, %v652
        %655 = vrot.lane.b32.xlu0 %v635, 127
        %v656 = vpop.permute.xlu0 %655
        %657 = vrot.lane.b32.xlu0 %v636, 127
        %v658 = vpop.permute.xlu0 %657
        %v659 = vsel %vm175, %v656, 0.0
        %v660 = vsel %vm175, %v658, 0.0
        %661 = vrot.lane.b32.xlu0 %v635, 1
        %v662 = vpop.permute.xlu0 %661
        %663 = vrot.lane.b32.xlu0 %v636, 1
        %v664 = vpop.permute.xlu0 %663
        %v665 = vsel %vm177, %v662, 0.0
        %v666 = vsel %vm177, %v664, 0.0
        %v667 = vmax.f32 %v659, %v665
        %v668 = vmax.f32 %v660, %v666
        %vm669 = vmand %vm167, %vm175
        %vm670 = vmand %vm168, %vm175
        %671 = vrot.lane.b32.xlu0 %v643, 127
        %v672 = vpop.permute.xlu0 %671
        %673 = vrot.lane.b32.xlu0 %v644, 127
        %v674 = vpop.permute.xlu0 %673
        %v675 = vsel %vm669, %v672, 0.0
        %v676 = vsel %vm670, %v674, 0.0
        %vm677 = vmand %vm171, %vm177
        %vm678 = vmand %vm172, %vm177
        %679 = vrot.lane.b32.xlu0 %v648, 1
        %v680 = vpop.permute.xlu0 %679
        %681 = vrot.lane.b32.xlu0 %v647, 1
        %v682 = vpop.permute.xlu0 %681
        %v683 = vsel %vm677, %v680, 0.0
        %v684 = vsel %vm678, %v682, 0.0
        %v685 = vmax.f32 %v675, %v683
        %v686 = vmax.f32 %v676, %v684
        %vm687 = vmand %vm167, %vm177
        %vm688 = vmand %vm168, %vm177
        %689 = vrot.lane.b32.xlu0 %v643, 1
        %v690 = vpop.permute.xlu0 %689
        %691 = vrot.lane.b32.xlu0 %v644, 1
        %v692 = vpop.permute.xlu0 %691
        %v693 = vsel %vm687, %v690, 0.0
        %v694 = vsel %vm688, %v692, 0.0
        %vm695 = vmand %vm171, %vm175
        %vm696 = vmand %vm172, %vm175
        %697 = vrot.lane.b32.xlu0 %v648, 127
        %v698 = vpop.permute.xlu0 %697
        %699 = vrot.lane.b32.xlu0 %v647, 127
        %v700 = vpop.permute.xlu0 %699
        %v701 = vsel %vm695, %v698, 0.0
        %v702 = vsel %vm696, %v700, 0.0
        %v703 = vmax.f32 %v693, %v701
        %v704 = vmax.f32 %v694, %v702
        %v705 = vand.u32 2147483647, %v637
        %v706 = vand.u32 2147483647, %v638
        %v707 = vand.u32 2147483647, %v639
        %v708 = vand.u32 2147483647, %v640
        %v709 = vmul.f32 %v705, 0.41421357
        %v710 = vmul.f32 %v706, 0.41421357
        %vm711 = vcmp.le.f32.partialorder %v707, %v709
        %vm712 = vcmp.le.f32.partialorder %v708, %v710
        %v713 = vmul.f32 %v705, 2.4142137
        %v714 = vmul.f32 %v706, 2.4142137
        %vm715 = vcmp.ge.f32.partialorder %v707, %v713
        %vm716 = vcmp.ge.f32.partialorder %v708, %v714
        %vm717 = vcmp.ge.f32.partialorder %v637, 0.0
        %vm718 = vcmp.ge.f32.partialorder %v638, 0.0
        %vm719 = vcmp.ge.f32.partialorder %v639, 0.0
        %vm720 = vcmp.ge.f32.partialorder %v640, 0.0
        %vm721 = vmxor %vm717, %vm719
        %vm722 = vmxor %vm718, %vm720
        %vm723 = vmxor %vm721, 1
        %vm724 = vmxor %vm722, 1
        %v725 = vsel %vm723, %v685, %v703
        %v726 = vsel %vm724, %v686, %v704
        %v727 = vsel %vm715, %v653, %v725
        %v728 = vsel %vm716, %v654, %v726
        %v729 = vsel %vm711, %v667, %v727
        %v730 = vsel %vm712, %v668, %v728
        %vm731 = vcmp.gt.f32.partialorder %v635, %v729
        %vm732 = vcmp.gt.f32.partialorder %v636, %v730
        %v733 = vsel %vm731, %v635, 0.0
        %v734 = vsel %vm732, %v636, 0.0
        %vm735 = vcmp.gt.f32.partialorder %v733, 100.0
        %vm736 = vcmp.gt.f32.partialorder %v734, 100.0
        %vm737 = vcmp.ge.f32.partialorder %v733, 10.0
        %vm738 = vcmp.ge.f32.partialorder %v734, 10.0
        %vm739 = vcmp.le.f32.partialorder %v733, 100.0
        %vm740 = vcmp.le.f32.partialorder %v734, 100.0
        %vm741 = vmand %vm737, %vm739
        %vm742 = vmand %vm738, %vm740
        %v743 = vsel %vm735, 1, 0
        %v744 = vsel %vm736, 1, 0
        %v745 = vcvt.s32.f32 %v743
        %v746 = vcvt.s32.f32 %v744
        %v747 = vrot.slane %v745, 1
        %v748 = vrot.slane %v746, 1
        %v749 = vsel %vm226, %v747, %v748
        %v750 = vsel %vm226, %v748, %v747
        %v751 = vsel %vm167, %v749, 0.0
        %v752 = vsel %vm168, %v750, 0.0
        %v753 = vadd.f32 %v745, %v751
        %v754 = vadd.f32 %v746, %v752
        %v755 = vrot.slane %v745, 7
        %v756 = vrot.slane %v746, 7
        %v757 = vsel %vm219, %v755, %v756
        %v758 = vsel %vm219, %v756, %v755
        %v759 = vsel %vm171, %v758, 0.0
        %v760 = vsel %vm172, %v757, 0.0
        %v761 = vadd.f32 %v753, %v759
        %v762 = vadd.f32 %v754, %v760
        %v763 = vsub.f32 %v761, %v745
        %v764 = vsub.f32 %v762, %v746
        %765 = vrot.lane.b32.xlu0 %v761, 127
        %v766 = vpop.permute.xlu0 %765
        %767 = vrot.lane.b32.xlu0 %v762, 127
        %v768 = vpop.permute.xlu0 %767
        %v769 = vsel %vm175, %v766, 0.0
        %v770 = vsel %vm175, %v768, 0.0
        %v771 = vadd.f32 %v763, %v769
        %v772 = vadd.f32 %v764, %v770
        %773 = vrot.lane.b32.xlu0 %v761, 1
        %v774 = vpop.permute.xlu0 %773
        %775 = vrot.lane.b32.xlu0 %v762, 1
        %v776 = vpop.permute.xlu0 %775
        %v777 = vsel %vm177, %v774, 0.0
        %v778 = vsel %vm177, %v776, 0.0
        %v779 = vadd.f32 %v771, %v777
        %v780 = vadd.f32 %v772, %v778
        %vm781 = vcmp.gt.f32.partialorder %v779, 0.0
        %vm782 = vcmp.gt.f32.partialorder %v780, 0.0
        %vm783 = vmand %vm741, %vm781
        %vm784 = vmand %vm742, %vm782
        %vm785 = vmor %vm735, %vm783
        %vm786 = vmor %vm736, %vm784
        %vm787 = vmand %vm171, %vm167
        %vm788 = vmand %vm172, %vm168
        %vm789 = vmand %vm787, %vm177
        %vm790 = vmand %vm788, %vm177
        %vm791 = vmand %vm789, %vm175
        %vm792 = vmand %vm790, %vm175
        %vm793 = vmand %vm785, %vm791
        %vm794 = vmand %vm786, %vm792
        %v795 = vsel %vm793, 1.0, 0.0
        %v796 = vsel %vm794, 1.0, 0.0
        %v797 = vpack.c.bf16 %v796, %v795
        %v799 = vunpack.c.l.b16 %v797
        %v800 = vunpack.c.h.b16 %v797
        %v801 = vpack.c.b16 %v799, %v799
        %v802 = vpack.c.b16 %v800, %v800
        %805 = vst [vmem:[%s159] sm:$0xf] %v801
        %806 = vst [vmem:[%s159 + $0x4] sm:$0xf] %v802
        %s807 = sand.u32 %s52, 1
        %s808 = scalar_lea.sflag [#allocation4], %s807
        %s809 = sand.u32 %s52, 1
        %s810 = smul.addr %s809, 8
        %s811 = scalar_lea.vmem [#allocation5], %s810
        // Predicated region
        $region29: #{tpu_custom_call.1} parent=23 // pred_check
          %p812 = pneg %p62
        $region30: #{tpu_custom_call.1} parent=23 // pred_check_branch
          %814 = sbr.rel (%p812) target = $region32
        $region31: #{tpu_custom_call.1} parent=23 // pred_region
          %s815 = smul.u32 2, %s18
          %s817 = ssub.s32 128, 128
          %818 = vsyncadd %s808, %s817
          %s819 = smul.addr %s815, 64
          %s820 = scalar_lea.hbm %s1, %s819
          %s821 = sshll.u32 %s811, 4
          %s822 = int_to_ptr.vmem [resolvable:$true] %s821
          %827 = dma.vmem_to_hbm [thread:$0]  %s822, 128, %s820, %s808, 64, 64, 4
        $region32: #{tpu_custom_call.1} parent=23 // pred_fallthru
          _
      $region24: #{tpu_custom_call.1} parent=5 // pred_fallthru
        _
      %p828 = scmp.le.s32.totalorder 2, %s13
      // Predicated region
      $region33: #{tpu_custom_call.1} parent=5 // pred_check
        %p829 = pneg %p828
      $region34: #{tpu_custom_call.1} parent=5 // pred_check_branch
        %831 = sbr.rel (%p829) target = $region36
      $region35: #{tpu_custom_call.1} parent=5 // pred_region
        %s832 = ssub.s32 %s13, 2
        // Predicated region
        $region37: #{tpu_custom_call.1} parent=35 // pred_check
          %p833 = pneg %p68
        $region38: #{tpu_custom_call.1} parent=35 // pred_check_branch
          %835 = sbr.rel (%p833) target = $region40
        $region39: #{tpu_custom_call.1} parent=35 // pred_region
          %s836 = sand.u32 %s53, 1
          %s837 = scalar_lea.sflag [#allocation4], %s836
          %s838 = sand.u32 %s53, 1
          %s839 = smul.addr %s838, 8
          %s840 = scalar_lea.vmem [#allocation5], %s839
          %841 = dma.done %s837, 128
        $region40: #{tpu_custom_call.1} parent=35 // pred_fallthru
          _
      $region36: #{tpu_custom_call.1} parent=5 // pred_fallthru
        _
    $region6: #{tpu_custom_call.1} parent=1 // loop_footer
      %s17 = sadd.s32 1, %s13
    $region7: #{tpu_custom_call.1} parent=1 // loop_footer_branch
      %12 = sbr.rel target = $region3
    $region8: #{tpu_custom_call.1} parent=1 // loop_exit
      _
    %842 = vsyncpa [#allocation3], 1
    %s843 = scalar_lea.sflag [#allocation3], 1
    %844 = vsyncpa %s843, 1
    %845 = vsyncpa [#allocation4], 1
    %s846 = scalar_lea.sflag [#allocation4], 1
    %847 = vsyncpa %s846, 1

</llo_original>
